<compile_context>
chip_gen: v6e
topology: v6e:2x2x1
jax: 0.10.0
libtpu: 0.0.40
codegen_flags: <defaults>
</compile_context>

<pallas_src>
import functools

import jax
import jax.numpy as jnp
import numpy as np
from jax import lax
from jax.experimental import pallas as pl
from jax.experimental.pallas import tpu as pltpu

# ----------------------------- configuration --------------------------------
D_MODEL = 32
N_HEAD = 4
HEAD_DIM = D_MODEL // N_HEAD
SEQ = 8
BATCH = 2
LN_EPS = 1e-5          # PyTorch nn.LayerNorm default
GELU_ALPHA = 1.702     # QuickGELU constant
NEG_INF = -1e30        # additive mask value (finite; exp underflows to 0)


def _layer_norm_f32(x, gamma, beta):
    """PyTorch-style LayerNorm over the last axis (biased variance, eps=1e-5)."""
    mu = jnp.mean(x, axis=-1, keepdims=True)
    var = jnp.mean((x - mu) * (x - mu), axis=-1, keepdims=True)
    return (x - mu) * jax.lax.rsqrt(var + LN_EPS) * gamma + beta


# ------------------------------- kernel --------------------------------------
def residual_attention_block_kernel(
    x_ref,                        # (SEQ, D)            f32 (squeezed batch block)
    ln1_g_ref, ln1_b_ref,         # (1, D)              f32
    wq_ref, bq_ref,               # (H, D, HD) bf16, (H, 1, HD) f32  (scale folded)
    wk_ref, bk_ref,               # (H, D, HD) bf16, (H, 1, HD) f32
    wv_ref, bv_ref,               # (H, D, HD) bf16, (H, 1, HD) f32
    wo_ref, bo_ref,               # (H, HD, D) bf16, (1, D) f32
    ln2_g_ref, ln2_b_ref,         # (1, D)              f32
    wfc_ref, bfc_ref,             # (D, 4D) bf16, (1, 4D) f32
    wproj_ref, bproj_ref,         # (4D, D) bf16, (1, D) f32
    out_ref,                      # (SEQ, D)
    *, causal: bool,
):
    seq, d = x_ref.shape
    x = x_ref[...].astype(jnp.float32)

    # ---- ln_1 (fp32) ----
    ln1 = _layer_norm_f32(x, ln1_g_ref[...], ln1_b_ref[...])
    ln1_b16 = ln1.astype(jnp.bfloat16)

    # Causal mask (CLIP text transformer): query i attends to keys j <= i.
    if causal:
        row = lax.broadcasted_iota(jnp.int32, (seq, seq), 0)
        col = lax.broadcasted_iota(jnp.int32, (seq, seq), 1)
        keep = col <= row

    # ---- multi-head self-attention (per-head weights, no lane slicing) ----
    def head_body(h, acc):
        q_h = jnp.dot(ln1_b16, wq_ref[h], preferred_element_type=jnp.float32) + bq_ref[h]
        k_h = jnp.dot(ln1_b16, wk_ref[h], preferred_element_type=jnp.float32) + bk_ref[h]
        v_h = jnp.dot(ln1_b16, wv_ref[h], preferred_element_type=jnp.float32) + bv_ref[h]
        # QK^T without materializing a transpose: contract last dims of both.
        s = lax.dot_general(
            q_h.astype(jnp.bfloat16), k_h.astype(jnp.bfloat16),
            (((1,), (1,)), ((), ())), preferred_element_type=jnp.float32)
        if causal:
            s = jnp.where(keep, s, jnp.float32(NEG_INF))
        s = s - jnp.max(s, axis=-1, keepdims=True)
        p = jnp.exp(s)
        p = p * pl.reciprocal(jnp.sum(p, axis=-1, keepdims=True), approx=True)
        o_h = jnp.dot(p.astype(jnp.bfloat16), v_h.astype(jnp.bfloat16),
                      preferred_element_type=jnp.float32)
        # Push this head straight through its slice of W_out (no concat needed).
        return acc + jnp.dot(o_h.astype(jnp.bfloat16), wo_ref[h],
                             preferred_element_type=jnp.float32)

    attn = lax.fori_loop(0, N_HEAD, head_body,
                         jnp.zeros((seq, d), jnp.float32), unroll=True)
    attn = attn + bo_ref[...]

    x1 = x + attn                                           # first residual

    # ---- ln_2 (fp32) + MLP (c_fc -> QuickGELU -> c_proj) ----
    ln2 = _layer_norm_f32(x1, ln2_g_ref[...], ln2_b_ref[...])
    hfc = jnp.dot(ln2.astype(jnp.bfloat16), wfc_ref[...],
                  preferred_element_type=jnp.float32) + bfc_ref[...]
    hfc = hfc * jax.nn.sigmoid(GELU_ALPHA * hfc)            # QuickGELU
    mlp = jnp.dot(hfc.astype(jnp.bfloat16), wproj_ref[...],
                  preferred_element_type=jnp.float32) + bproj_ref[...]

    out_ref[...] = (x1 + mlp).astype(out_ref.dtype)         # second residual


# ------------------------------- wrapper --------------------------------------
def residual_attention_block(x, params, *, causal=True):
    """x: (SEQ, BATCH, D_MODEL) -> (SEQ, BATCH, D_MODEL). params use PyTorch layout."""
    seq, batch, d = x.shape
    scale = 1.0 / (HEAD_DIM ** 0.5)

    wqkv, bqkv = params["wqkv"], params["bqkv"]            # (3D, D), (1, 3D)

    # One-time weight layout plumbing:
    #  - split the fused qkv projection and transpose so the kernel computes x @ W,
    #  - split per head into leading-axis stacks (no in-kernel lane slicing),
    #  - fold 1/sqrt(head_dim) into the q path,
    #  - pre-cast every matmul weight to bf16 (MXU-native; f32 accumulation).
    def per_head_in(w_t):                                   # (D, D) -> (H, D, HD)
        return jnp.transpose(w_t.reshape(d, N_HEAD, HEAD_DIM), (1, 0, 2))

    wq_h = per_head_in(wqkv[:d].T * scale).astype(jnp.bfloat16)
    wk_h = per_head_in(wqkv[d:2 * d].T).astype(jnp.bfloat16)
    wv_h = per_head_in(wqkv[2 * d:].T).astype(jnp.bfloat16)
    bq_h = (bqkv[0, :d] * scale).reshape(N_HEAD, 1, HEAD_DIM)
    bk_h = bqkv[0, d:2 * d].reshape(N_HEAD, 1, HEAD_DIM)
    bv_h = bqkv[0, 2 * d:].reshape(N_HEAD, 1, HEAD_DIM)
    wo_h = params["wo"].T.reshape(N_HEAD, HEAD_DIM, d).astype(jnp.bfloat16)
    wfc_t = params["wfc"].T.astype(jnp.bfloat16)            # (D, 4D)
    wproj_t = params["wproj"].T.astype(jnp.bfloat16)        # (4D, D)

    # One wrapper transpose so each grid step gets a contiguous (SEQ, D) slab.
    x_bsd = jnp.transpose(x, (1, 0, 2))                     # (BATCH, SEQ, D)

    operands = [
        x_bsd,
        params["ln1_g"], params["ln1_b"],
        wq_h, bq_h, wk_h, bk_h, wv_h, bv_h,
        wo_h, params["bo"],
        params["ln2_g"], params["ln2_b"],
        wfc_t, params["bfc"],
        wproj_t, params["bproj"],
    ]

    act_spec = pl.BlockSpec((None, seq, d), lambda b: (b, 0, 0))
    vmem_spec = pl.BlockSpec(memory_space=pltpu.MemorySpace.VMEM)

    out_bsd = pl.pallas_call(
        functools.partial(residual_attention_block_kernel, causal=causal),
        out_shape=jax.ShapeDtypeStruct((batch, seq, d), x.dtype),
        grid=(batch,),
        in_specs=[act_spec] + [vmem_spec] * (len(operands) - 1),
        out_specs=pl.BlockSpec((None, seq, d), lambda b: (b, 0, 0)),
        compiler_params=pltpu.CompilerParams(
            dimension_semantics=("parallel",)),
    )(*operands)

    return jnp.transpose(out_bsd, (1, 0, 2))                # back to (SEQ, BATCH, D)


# ----------------------------- pure-JAX reference ------------------------------
def reference_block(x, params, *, causal=True):
    def ln(v, g, b):
        v = v.astype(jnp.float32)
        mu = jnp.mean(v, axis=-1, keepdims=True)
        var = jnp.mean((v - mu) ** 2, axis=-1, keepdims=True)
        return (v - mu) / jnp.sqrt(var + LN_EPS) * g + b

    seq, batch, d = x.shape
    xf = x.astype(jnp.float32)

    ln1 = ln(xf, params["ln1_g"][0], params["ln1_b"][0])
    qkv = ln1 @ params["wqkv"].T + params["bqkv"][0]
    q, k, v = qkv[..., :d], qkv[..., d:2 * d], qkv[..., 2 * d:]

    def split_heads(t):  # (S, B, D) -> (B, H, S, hd)
        return jnp.transpose(t.reshape(seq, batch, N_HEAD, HEAD_DIM), (1, 2, 0, 3))

    qh, kh, vh = split_heads(q), split_heads(k), split_heads(v)
    s = jnp.einsum("bhqd,bhkd->bhqk", qh, kh) / (HEAD_DIM ** 0.5)
    if causal:
        mask = jnp.tril(jnp.ones((seq, seq), dtype=bool))
        s = jnp.where(mask, s, -jnp.inf)
    p = jax.nn.softmax(s, axis=-1)
    o = jnp.einsum("bhqk,bhkd->bhqd", p, vh)
    o = jnp.transpose(o, (2, 0, 1, 3)).reshape(seq, batch, d)
    attn_out = o @ params["wo"].T + params["bo"][0]

    x1 = xf + attn_out
    ln2 = ln(x1, params["ln2_g"][0], params["ln2_b"][0])
    h = ln2 @ params["wfc"].T + params["bfc"][0]
    h = h * jax.nn.sigmoid(GELU_ALPHA * h)
    mlp = h @ params["wproj"].T + params["bproj"][0]
    return (x1 + mlp).astype(x.dtype)


# --------------------------------- main ----------------------------------------
if __name__ == "__main__":
    key = jax.random.PRNGKey(0)
    kx, k0, k1, k2, k3, k4, k5, k6, k7 = jax.random.split(key, 9)

    def nrm(k, shape, scale=0.02):
        return (scale * jax.random.normal(k, shape)).astype(jnp.float32)

    params = {
        "ln1_g": jnp.ones((1, D_MODEL), jnp.float32),
        "ln1_b": jnp.zeros((1, D_MODEL), jnp.float32),
        "wqkv": nrm(k0, (3 * D_MODEL, D_MODEL)),
        "bqkv": nrm(k1, (1, 3 * D_MODEL)),
        "wo": nrm(k2, (D_MODEL, D_MODEL)),
        "bo": nrm(k3, (1, D_MODEL)),
        "ln2_g": jnp.ones((1, D_MODEL), jnp.float32),
        "ln2_b": jnp.zeros((1, D_MODEL), jnp.float32),
        "wfc": nrm(k4, (4 * D_MODEL, D_MODEL)),
        "bfc": nrm(k5, (1, 4 * D_MODEL)),
        "wproj": nrm(k6, (D_MODEL, 4 * D_MODEL)),
        "bproj": nrm(k7, (1, D_MODEL)),
    }

    x = jax.random.normal(kx, (SEQ, BATCH, D_MODEL), dtype=jnp.float32)

    # Tolerance accounts for bf16 MXU operands and the EUP approximate reciprocal in
    # the softmax denominator (the reference runs exact f32 matmuls / softmax).
    RTOL, ATOL = 2e-2, 5e-3

    # Causal path (CrossMoST's text transformer: build_attention_mask).
    out_c = jax.block_until_ready(residual_attention_block(x, params, causal=True))
    ref_c = reference_block(x, params, causal=True)
    np.testing.assert_allclose(np.asarray(out_c), np.asarray(ref_c), rtol=RTOL, atol=ATOL)

    # attn_mask=None path.
    out_n = jax.block_until_ready(residual_attention_block(x, params, causal=False))
    ref_n = reference_block(x, params, causal=False)
    np.testing.assert_allclose(np.asarray(out_n), np.asarray(ref_n), rtol=RTOL, atol=ATOL)

    print("KERNEL_OK")
</pallas_src>

<mosaic_0001>
module attributes {stable_mosaic.version = 11 : i64} {
  func.func @residual_attention_block_kernel(%arg0: i32, %arg1: memref<1x8x32xf32, #tpu.memory_space<vmem>>, %arg2: memref<1x32xf32, #tpu.memory_space<vmem>>, %arg3: memref<1x32xf32, #tpu.memory_space<vmem>>, %arg4: memref<4x32x8xbf16, #tpu.memory_space<vmem>>, %arg5: memref<4x1x8xf32, #tpu.memory_space<vmem>>, %arg6: memref<4x32x8xbf16, #tpu.memory_space<vmem>>, %arg7: memref<4x1x8xf32, #tpu.memory_space<vmem>>, %arg8: memref<4x32x8xbf16, #tpu.memory_space<vmem>>, %arg9: memref<4x1x8xf32, #tpu.memory_space<vmem>>, %arg10: memref<4x8x32xbf16, #tpu.memory_space<vmem>>, %arg11: memref<1x32xf32, #tpu.memory_space<vmem>>, %arg12: memref<1x32xf32, #tpu.memory_space<vmem>>, %arg13: memref<1x32xf32, #tpu.memory_space<vmem>>, %arg14: memref<32x128xbf16, #tpu.memory_space<vmem>>, %arg15: memref<1x128xf32, #tpu.memory_space<vmem>>, %arg16: memref<128x32xbf16, #tpu.memory_space<vmem>>, %arg17: memref<1x32xf32, #tpu.memory_space<vmem>>, %arg18: memref<1x8x32xf32, #tpu.memory_space<vmem>>) attributes {dimension_semantics = [#tpu.dimension_semantics<parallel>], iteration_bounds = array<i64: 2>, scalar_prefetch = 0 : i64, scratch_operands = 0 : i64, tpu.core_type = #tpu.core_type<tc>, window_params = [{transform_indices = @transform_0, window_bounds = array<i64: 1, 8, 32>}, {pipeline_mode = #tpu.pipeline_mode<synchronous>, transform_indices = @transform_1, window_bounds = array<i64: 1, 32>}, {pipeline_mode = #tpu.pipeline_mode<synchronous>, transform_indices = @transform_2, window_bounds = array<i64: 1, 32>}, {pipeline_mode = #tpu.pipeline_mode<synchronous>, transform_indices = @transform_3, window_bounds = array<i64: 4, 32, 8>}, {pipeline_mode = #tpu.pipeline_mode<synchronous>, transform_indices = @transform_4, window_bounds = array<i64: 4, 1, 8>}, {pipeline_mode = #tpu.pipeline_mode<synchronous>, transform_indices = @transform_5, window_bounds = array<i64: 4, 32, 8>}, {pipeline_mode = #tpu.pipeline_mode<synchronous>, transform_indices = @transform_6, window_bounds = array<i64: 4, 1, 8>}, {pipeline_mode = #tpu.pipeline_mode<synchronous>, transform_indices = @transform_7, window_bounds = array<i64: 4, 32, 8>}, {pipeline_mode = #tpu.pipeline_mode<synchronous>, transform_indices = @transform_8, window_bounds = array<i64: 4, 1, 8>}, {pipeline_mode = #tpu.pipeline_mode<synchronous>, transform_indices = @transform_9, window_bounds = array<i64: 4, 8, 32>}, {pipeline_mode = #tpu.pipeline_mode<synchronous>, transform_indices = @transform_10, window_bounds = array<i64: 1, 32>}, {pipeline_mode = #tpu.pipeline_mode<synchronous>, transform_indices = @transform_11, window_bounds = array<i64: 1, 32>}, {pipeline_mode = #tpu.pipeline_mode<synchronous>, transform_indices = @transform_12, window_bounds = array<i64: 1, 32>}, {pipeline_mode = #tpu.pipeline_mode<synchronous>, transform_indices = @transform_13, window_bounds = array<i64: 32, 128>}, {pipeline_mode = #tpu.pipeline_mode<synchronous>, transform_indices = @transform_14, window_bounds = array<i64: 1, 128>}, {pipeline_mode = #tpu.pipeline_mode<synchronous>, transform_indices = @transform_15, window_bounds = array<i64: 128, 32>}, {pipeline_mode = #tpu.pipeline_mode<synchronous>, transform_indices = @transform_16, window_bounds = array<i64: 1, 32>}, {transform_indices = @transform_17, window_bounds = array<i64: 1, 8, 32>}]} {
    %c0 = arith.constant 0 : index
    %c0_0 = arith.constant 0 : index
    %c0_1 = arith.constant 0 : index
    %0 = vector.load %arg1[%c0, %c0_0, %c0_1] : memref<1x8x32xf32, #tpu.memory_space<vmem>>, vector<1x8x32xf32>
    %1 = vector.shape_cast %0 : vector<1x8x32xf32> to vector<8x32xf32>
    %c0_2 = arith.constant 0 : index
    %c0_3 = arith.constant 0 : index
    %2 = vector.load %arg2[%c0_2, %c0_3] : memref<1x32xf32, #tpu.memory_space<vmem>>, vector<1x32xf32>
    %c0_4 = arith.constant 0 : index
    %c0_5 = arith.constant 0 : index
    %3 = vector.load %arg3[%c0_4, %c0_5] : memref<1x32xf32, #tpu.memory_space<vmem>>, vector<1x32xf32>
    %cst = arith.constant dense<0.000000e+00> : vector<8xf32>
    %4 = vector.multi_reduction <add>, %1, %cst [1] : vector<8x32xf32> to vector<8xf32>
    %5 = vector.shape_cast %4 : vector<8xf32> to vector<8x1xf32>
    %cst_6 = arith.constant 3.200000e+01 : f32
    %6 = vector.broadcast %cst_6 : f32 to vector<8x1xf32>
    %7 = arith.divf %5, %6 : vector<8x1xf32>
    %8 = vector.broadcast %7 : vector<8x1xf32> to vector<8x32xf32>
    %9 = arith.subf %1, %8 : vector<8x32xf32>
    %10 = vector.broadcast %7 : vector<8x1xf32> to vector<8x32xf32>
    %11 = arith.subf %1, %10 : vector<8x32xf32>
    %12 = arith.mulf %9, %11 : vector<8x32xf32>
    %cst_7 = arith.constant dense<0.000000e+00> : vector<8xf32>
    %13 = vector.multi_reduction <add>, %12, %cst_7 [1] : vector<8x32xf32> to vector<8xf32>
    %14 = vector.shape_cast %13 : vector<8xf32> to vector<8x1xf32>
    %cst_8 = arith.constant 3.200000e+01 : f32
    %15 = vector.broadcast %cst_8 : f32 to vector<8x1xf32>
    %16 = arith.divf %14, %15 : vector<8x1xf32>
    %17 = vector.broadcast %7 : vector<8x1xf32> to vector<8x32xf32>
    %18 = arith.subf %1, %17 : vector<8x32xf32>
    %cst_9 = arith.constant 9.99999974E-6 : f32
    %19 = vector.broadcast %cst_9 : f32 to vector<8x1xf32>
    %20 = arith.addf %16, %19 : vector<8x1xf32>
    %21 = math.rsqrt %20 : vector<8x1xf32>
    %22 = vector.broadcast %21 : vector<8x1xf32> to vector<8x32xf32>
    %23 = arith.mulf %18, %22 : vector<8x32xf32>
    %24 = vector.broadcast %2 : vector<1x32xf32> to vector<8x32xf32>
    %25 = arith.mulf %23, %24 : vector<8x32xf32>
    %26 = vector.broadcast %3 : vector<1x32xf32> to vector<8x32xf32>
    %27 = arith.addf %25, %26 : vector<8x32xf32>
    %28 = arith.truncf %27 : vector<8x32xf32> to vector<8x32xbf16>
    %29 = tpu.iota {dimensions = array<i32: 0>} : vector<8x8xi32>
    %30 = tpu.iota {dimensions = array<i32: 1>} : vector<8x8xi32>
    %31 = arith.cmpi sle, %30, %29 : vector<8x8xi32>
    %cst_10 = arith.constant 0.000000e+00 : f32
    %32 = vector.broadcast %cst_10 : f32 to vector<8x32xf32>
    %c0_i32 = arith.constant 0 : i32
    %33 = arith.index_cast %c0_i32 : i32 to index
    %c0_11 = arith.constant 0 : index
    %c0_12 = arith.constant 0 : index
    %34 = vector.load %arg4[%33, %c0_11, %c0_12] : memref<4x32x8xbf16, #tpu.memory_space<vmem>>, vector<1x32x8xbf16>
    %35 = vector.shape_cast %34 : vector<1x32x8xbf16> to vector<32x8xbf16>
    %cst_13 = arith.constant dense<0.000000e+00> : vector<8x8xf32>
    %36 = tpu.matmul %28, %35, %cst_13 {dimension_numbers = #tpu.dot_dimension_numbers<[1], [0], [0], [1], [0, 0, 1, 1], [], []>} : vector<8x32xbf16>, vector<32x8xbf16>, vector<8x8xf32> -> vector<8x8xf32>
    %37 = arith.index_cast %c0_i32 : i32 to index
    %c0_14 = arith.constant 0 : index
    %c0_15 = arith.constant 0 : index
    %38 = vector.load %arg5[%37, %c0_14, %c0_15] : memref<4x1x8xf32, #tpu.memory_space<vmem>>, vector<1x1x8xf32>
    %39 = vector.shape_cast %38 : vector<1x1x8xf32> to vector<1x8xf32>
    %40 = vector.broadcast %39 : vector<1x8xf32> to vector<8x8xf32>
    %41 = arith.addf %36, %40 : vector<8x8xf32>
    %42 = arith.index_cast %c0_i32 : i32 to index
    %c0_16 = arith.constant 0 : index
    %c0_17 = arith.constant 0 : index
    %43 = vector.load %arg6[%42, %c0_16, %c0_17] : memref<4x32x8xbf16, #tpu.memory_space<vmem>>, vector<1x32x8xbf16>
    %44 = vector.shape_cast %43 : vector<1x32x8xbf16> to vector<32x8xbf16>
    %cst_18 = arith.constant dense<0.000000e+00> : vector<8x8xf32>
    %45 = tpu.matmul %28, %44, %cst_18 {dimension_numbers = #tpu.dot_dimension_numbers<[1], [0], [0], [1], [0, 0, 1, 1], [], []>} : vector<8x32xbf16>, vector<32x8xbf16>, vector<8x8xf32> -> vector<8x8xf32>
    %46 = arith.index_cast %c0_i32 : i32 to index
    %c0_19 = arith.constant 0 : index
    %c0_20 = arith.constant 0 : index
    %47 = vector.load %arg7[%46, %c0_19, %c0_20] : memref<4x1x8xf32, #tpu.memory_space<vmem>>, vector<1x1x8xf32>
    %48 = vector.shape_cast %47 : vector<1x1x8xf32> to vector<1x8xf32>
    %49 = vector.broadcast %48 : vector<1x8xf32> to vector<8x8xf32>
    %50 = arith.addf %45, %49 : vector<8x8xf32>
    %51 = arith.index_cast %c0_i32 : i32 to index
    %c0_21 = arith.constant 0 : index
    %c0_22 = arith.constant 0 : index
    %52 = vector.load %arg8[%51, %c0_21, %c0_22] : memref<4x32x8xbf16, #tpu.memory_space<vmem>>, vector<1x32x8xbf16>
    %53 = vector.shape_cast %52 : vector<1x32x8xbf16> to vector<32x8xbf16>
    %cst_23 = arith.constant dense<0.000000e+00> : vector<8x8xf32>
    %54 = tpu.matmul %28, %53, %cst_23 {dimension_numbers = #tpu.dot_dimension_numbers<[1], [0], [0], [1], [0, 0, 1, 1], [], []>} : vector<8x32xbf16>, vector<32x8xbf16>, vector<8x8xf32> -> vector<8x8xf32>
    %55 = arith.index_cast %c0_i32 : i32 to index
    %c0_24 = arith.constant 0 : index
    %c0_25 = arith.constant 0 : index
    %56 = vector.load %arg9[%55, %c0_24, %c0_25] : memref<4x1x8xf32, #tpu.memory_space<vmem>>, vector<1x1x8xf32>
    %57 = vector.shape_cast %56 : vector<1x1x8xf32> to vector<1x8xf32>
    %58 = vector.broadcast %57 : vector<1x8xf32> to vector<8x8xf32>
    %59 = arith.addf %54, %58 : vector<8x8xf32>
    %60 = arith.truncf %41 : vector<8x8xf32> to vector<8x8xbf16>
    %61 = arith.truncf %50 : vector<8x8xf32> to vector<8x8xbf16>
    %cst_26 = arith.constant dense<0.000000e+00> : vector<8x8xf32>
    %62 = tpu.matmul %60, %61, %cst_26 {dimension_numbers = #tpu.dot_dimension_numbers<[1], [1], [0], [0], [0, 0, 1, 0], [], []>} : vector<8x8xbf16>, vector<8x8xbf16>, vector<8x8xf32> -> vector<8x8xf32>
    %cst_27 = arith.constant -1.000000e+30 : f32
    %63 = vector.broadcast %cst_27 : f32 to vector<8x8xf32>
    %64 = arith.select %31, %62, %63 : vector<8x8xi1>, vector<8x8xf32>
    %cst_28 = arith.constant dense<0xFF800000> : vector<8xf32>
    %65 = vector.multi_reduction <maximumf>, %64, %cst_28 [1] : vector<8x8xf32> to vector<8xf32>
    %66 = vector.shape_cast %65 : vector<8xf32> to vector<8x1xf32>
    %67 = vector.broadcast %66 : vector<8x1xf32> to vector<8x8xf32>
    %68 = arith.subf %64, %67 : vector<8x8xf32>
    %69 = math.exp %68 : vector<8x8xf32>
    %cst_29 = arith.constant dense<0.000000e+00> : vector<8xf32>
    %70 = vector.multi_reduction <add>, %69, %cst_29 [1] : vector<8x8xf32> to vector<8xf32>
    %71 = vector.shape_cast %70 : vector<8xf32> to vector<8x1xf32>
    %72 = tpu.reciprocal %71 {approx = true} : vector<8x1xf32> -> vector<8x1xf32>
    %73 = vector.broadcast %72 : vector<8x1xf32> to vector<8x8xf32>
    %74 = arith.mulf %69, %73 : vector<8x8xf32>
    %75 = arith.truncf %74 : vector<8x8xf32> to vector<8x8xbf16>
    %76 = arith.truncf %59 : vector<8x8xf32> to vector<8x8xbf16>
    %cst_30 = arith.constant dense<0.000000e+00> : vector<8x8xf32>
    %77 = tpu.matmul %75, %76, %cst_30 {dimension_numbers = #tpu.dot_dimension_numbers<[1], [0], [0], [1], [0, 0, 1, 1], [], []>} : vector<8x8xbf16>, vector<8x8xbf16>, vector<8x8xf32> -> vector<8x8xf32>
    %78 = arith.truncf %77 : vector<8x8xf32> to vector<8x8xbf16>
    %79 = arith.index_cast %c0_i32 : i32 to index
    %c0_31 = arith.constant 0 : index
    %c0_32 = arith.constant 0 : index
    %80 = vector.load %arg10[%79, %c0_31, %c0_32] : memref<4x8x32xbf16, #tpu.memory_space<vmem>>, vector<1x8x32xbf16>
    %81 = vector.shape_cast %80 : vector<1x8x32xbf16> to vector<8x32xbf16>
    %cst_33 = arith.constant dense<0.000000e+00> : vector<8x32xf32>
    %82 = tpu.matmul %78, %81, %cst_33 {dimension_numbers = #tpu.dot_dimension_numbers<[1], [0], [0], [1], [0, 0, 1, 1], [], []>} : vector<8x8xbf16>, vector<8x32xbf16>, vector<8x32xf32> -> vector<8x32xf32>
    %83 = arith.addf %32, %82 : vector<8x32xf32>
    %c1_i32 = arith.constant 1 : i32
    %84 = arith.index_cast %c1_i32 : i32 to index
    %c0_34 = arith.constant 0 : index
    %c0_35 = arith.constant 0 : index
    %85 = vector.load %arg4[%84, %c0_34, %c0_35] : memref<4x32x8xbf16, #tpu.memory_space<vmem>>, vector<1x32x8xbf16>
    %86 = vector.shape_cast %85 : vector<1x32x8xbf16> to vector<32x8xbf16>
    %cst_36 = arith.constant dense<0.000000e+00> : vector<8x8xf32>
    %87 = tpu.matmul %28, %86, %cst_36 {dimension_numbers = #tpu.dot_dimension_numbers<[1], [0], [0], [1], [0, 0, 1, 1], [], []>} : vector<8x32xbf16>, vector<32x8xbf16>, vector<8x8xf32> -> vector<8x8xf32>
    %88 = arith.index_cast %c1_i32 : i32 to index
    %c0_37 = arith.constant 0 : index
    %c0_38 = arith.constant 0 : index
    %89 = vector.load %arg5[%88, %c0_37, %c0_38] : memref<4x1x8xf32, #tpu.memory_space<vmem>>, vector<1x1x8xf32>
    %90 = vector.shape_cast %89 : vector<1x1x8xf32> to vector<1x8xf32>
    %91 = vector.broadcast %90 : vector<1x8xf32> to vector<8x8xf32>
    %92 = arith.addf %87, %91 : vector<8x8xf32>
    %93 = arith.index_cast %c1_i32 : i32 to index
    %c0_39 = arith.constant 0 : index
    %c0_40 = arith.constant 0 : index
    %94 = vector.load %arg6[%93, %c0_39, %c0_40] : memref<4x32x8xbf16, #tpu.memory_space<vmem>>, vector<1x32x8xbf16>
    %95 = vector.shape_cast %94 : vector<1x32x8xbf16> to vector<32x8xbf16>
    %cst_41 = arith.constant dense<0.000000e+00> : vector<8x8xf32>
    %96 = tpu.matmul %28, %95, %cst_41 {dimension_numbers = #tpu.dot_dimension_numbers<[1], [0], [0], [1], [0, 0, 1, 1], [], []>} : vector<8x32xbf16>, vector<32x8xbf16>, vector<8x8xf32> -> vector<8x8xf32>
    %97 = arith.index_cast %c1_i32 : i32 to index
    %c0_42 = arith.constant 0 : index
    %c0_43 = arith.constant 0 : index
    %98 = vector.load %arg7[%97, %c0_42, %c0_43] : memref<4x1x8xf32, #tpu.memory_space<vmem>>, vector<1x1x8xf32>
    %99 = vector.shape_cast %98 : vector<1x1x8xf32> to vector<1x8xf32>
    %100 = vector.broadcast %99 : vector<1x8xf32> to vector<8x8xf32>
    %101 = arith.addf %96, %100 : vector<8x8xf32>
    %102 = arith.index_cast %c1_i32 : i32 to index
    %c0_44 = arith.constant 0 : index
    %c0_45 = arith.constant 0 : index
    %103 = vector.load %arg8[%102, %c0_44, %c0_45] : memref<4x32x8xbf16, #tpu.memory_space<vmem>>, vector<1x32x8xbf16>
    %104 = vector.shape_cast %103 : vector<1x32x8xbf16> to vector<32x8xbf16>
    %cst_46 = arith.constant dense<0.000000e+00> : vector<8x8xf32>
    %105 = tpu.matmul %28, %104, %cst_46 {dimension_numbers = #tpu.dot_dimension_numbers<[1], [0], [0], [1], [0, 0, 1, 1], [], []>} : vector<8x32xbf16>, vector<32x8xbf16>, vector<8x8xf32> -> vector<8x8xf32>
    %106 = arith.index_cast %c1_i32 : i32 to index
    %c0_47 = arith.constant 0 : index
    %c0_48 = arith.constant 0 : index
    %107 = vector.load %arg9[%106, %c0_47, %c0_48] : memref<4x1x8xf32, #tpu.memory_space<vmem>>, vector<1x1x8xf32>
    %108 = vector.shape_cast %107 : vector<1x1x8xf32> to vector<1x8xf32>
    %109 = vector.broadcast %108 : vector<1x8xf32> to vector<8x8xf32>
    %110 = arith.addf %105, %109 : vector<8x8xf32>
    %111 = arith.truncf %92 : vector<8x8xf32> to vector<8x8xbf16>
    %112 = arith.truncf %101 : vector<8x8xf32> to vector<8x8xbf16>
    %cst_49 = arith.constant dense<0.000000e+00> : vector<8x8xf32>
    %113 = tpu.matmul %111, %112, %cst_49 {dimension_numbers = #tpu.dot_dimension_numbers<[1], [1], [0], [0], [0, 0, 1, 0], [], []>} : vector<8x8xbf16>, vector<8x8xbf16>, vector<8x8xf32> -> vector<8x8xf32>
    %cst_50 = arith.constant -1.000000e+30 : f32
    %114 = vector.broadcast %cst_50 : f32 to vector<8x8xf32>
    %115 = arith.select %31, %113, %114 : vector<8x8xi1>, vector<8x8xf32>
    %cst_51 = arith.constant dense<0xFF800000> : vector<8xf32>
    %116 = vector.multi_reduction <maximumf>, %115, %cst_51 [1] : vector<8x8xf32> to vector<8xf32>
    %117 = vector.shape_cast %116 : vector<8xf32> to vector<8x1xf32>
    %118 = vector.broadcast %117 : vector<8x1xf32> to vector<8x8xf32>
    %119 = arith.subf %115, %118 : vector<8x8xf32>
    %120 = math.exp %119 : vector<8x8xf32>
    %cst_52 = arith.constant dense<0.000000e+00> : vector<8xf32>
    %121 = vector.multi_reduction <add>, %120, %cst_52 [1] : vector<8x8xf32> to vector<8xf32>
    %122 = vector.shape_cast %121 : vector<8xf32> to vector<8x1xf32>
    %123 = tpu.reciprocal %122 {approx = true} : vector<8x1xf32> -> vector<8x1xf32>
    %124 = vector.broadcast %123 : vector<8x1xf32> to vector<8x8xf32>
    %125 = arith.mulf %120, %124 : vector<8x8xf32>
    %126 = arith.truncf %125 : vector<8x8xf32> to vector<8x8xbf16>
    %127 = arith.truncf %110 : vector<8x8xf32> to vector<8x8xbf16>
    %cst_53 = arith.constant dense<0.000000e+00> : vector<8x8xf32>
    %128 = tpu.matmul %126, %127, %cst_53 {dimension_numbers = #tpu.dot_dimension_numbers<[1], [0], [0], [1], [0, 0, 1, 1], [], []>} : vector<8x8xbf16>, vector<8x8xbf16>, vector<8x8xf32> -> vector<8x8xf32>
    %129 = arith.truncf %128 : vector<8x8xf32> to vector<8x8xbf16>
    %130 = arith.index_cast %c1_i32 : i32 to index
    %c0_54 = arith.constant 0 : index
    %c0_55 = arith.constant 0 : index
    %131 = vector.load %arg10[%130, %c0_54, %c0_55] : memref<4x8x32xbf16, #tpu.memory_space<vmem>>, vector<1x8x32xbf16>
    %132 = vector.shape_cast %131 : vector<1x8x32xbf16> to vector<8x32xbf16>
    %cst_56 = arith.constant dense<0.000000e+00> : vector<8x32xf32>
    %133 = tpu.matmul %129, %132, %cst_56 {dimension_numbers = #tpu.dot_dimension_numbers<[1], [0], [0], [1], [0, 0, 1, 1], [], []>} : vector<8x8xbf16>, vector<8x32xbf16>, vector<8x32xf32> -> vector<8x32xf32>
    %134 = arith.addf %83, %133 : vector<8x32xf32>
    %c2_i32 = arith.constant 2 : i32
    %135 = arith.index_cast %c2_i32 : i32 to index
    %c0_57 = arith.constant 0 : index
    %c0_58 = arith.constant 0 : index
    %136 = vector.load %arg4[%135, %c0_57, %c0_58] : memref<4x32x8xbf16, #tpu.memory_space<vmem>>, vector<1x32x8xbf16>
    %137 = vector.shape_cast %136 : vector<1x32x8xbf16> to vector<32x8xbf16>
    %cst_59 = arith.constant dense<0.000000e+00> : vector<8x8xf32>
    %138 = tpu.matmul %28, %137, %cst_59 {dimension_numbers = #tpu.dot_dimension_numbers<[1], [0], [0], [1], [0, 0, 1, 1], [], []>} : vector<8x32xbf16>, vector<32x8xbf16>, vector<8x8xf32> -> vector<8x8xf32>
    %139 = arith.index_cast %c2_i32 : i32 to index
    %c0_60 = arith.constant 0 : index
    %c0_61 = arith.constant 0 : index
    %140 = vector.load %arg5[%139, %c0_60, %c0_61] : memref<4x1x8xf32, #tpu.memory_space<vmem>>, vector<1x1x8xf32>
    %141 = vector.shape_cast %140 : vector<1x1x8xf32> to vector<1x8xf32>
    %142 = vector.broadcast %141 : vector<1x8xf32> to vector<8x8xf32>
    %143 = arith.addf %138, %142 : vector<8x8xf32>
    %144 = arith.index_cast %c2_i32 : i32 to index
    %c0_62 = arith.constant 0 : index
    %c0_63 = arith.constant 0 : index
    %145 = vector.load %arg6[%144, %c0_62, %c0_63] : memref<4x32x8xbf16, #tpu.memory_space<vmem>>, vector<1x32x8xbf16>
    %146 = vector.shape_cast %145 : vector<1x32x8xbf16> to vector<32x8xbf16>
    %cst_64 = arith.constant dense<0.000000e+00> : vector<8x8xf32>
    %147 = tpu.matmul %28, %146, %cst_64 {dimension_numbers = #tpu.dot_dimension_numbers<[1], [0], [0], [1], [0, 0, 1, 1], [], []>} : vector<8x32xbf16>, vector<32x8xbf16>, vector<8x8xf32> -> vector<8x8xf32>
    %148 = arith.index_cast %c2_i32 : i32 to index
    %c0_65 = arith.constant 0 : index
    %c0_66 = arith.constant 0 : index
    %149 = vector.load %arg7[%148, %c0_65, %c0_66] : memref<4x1x8xf32, #tpu.memory_space<vmem>>, vector<1x1x8xf32>
    %150 = vector.shape_cast %149 : vector<1x1x8xf32> to vector<1x8xf32>
    %151 = vector.broadcast %150 : vector<1x8xf32> to vector<8x8xf32>
    %152 = arith.addf %147, %151 : vector<8x8xf32>
    %153 = arith.index_cast %c2_i32 : i32 to index
    %c0_67 = arith.constant 0 : index
    %c0_68 = arith.constant 0 : index
    %154 = vector.load %arg8[%153, %c0_67, %c0_68] : memref<4x32x8xbf16, #tpu.memory_space<vmem>>, vector<1x32x8xbf16>
    %155 = vector.shape_cast %154 : vector<1x32x8xbf16> to vector<32x8xbf16>
    %cst_69 = arith.constant dense<0.000000e+00> : vector<8x8xf32>
    %156 = tpu.matmul %28, %155, %cst_69 {dimension_numbers = #tpu.dot_dimension_numbers<[1], [0], [0], [1], [0, 0, 1, 1], [], []>} : vector<8x32xbf16>, vector<32x8xbf16>, vector<8x8xf32> -> vector<8x8xf32>
    %157 = arith.index_cast %c2_i32 : i32 to index
    %c0_70 = arith.constant 0 : index
    %c0_71 = arith.constant 0 : index
    %158 = vector.load %arg9[%157, %c0_70, %c0_71] : memref<4x1x8xf32, #tpu.memory_space<vmem>>, vector<1x1x8xf32>
    %159 = vector.shape_cast %158 : vector<1x1x8xf32> to vector<1x8xf32>
    %160 = vector.broadcast %159 : vector<1x8xf32> to vector<8x8xf32>
    %161 = arith.addf %156, %160 : vector<8x8xf32>
    %162 = arith.truncf %143 : vector<8x8xf32> to vector<8x8xbf16>
    %163 = arith.truncf %152 : vector<8x8xf32> to vector<8x8xbf16>
    %cst_72 = arith.constant dense<0.000000e+00> : vector<8x8xf32>
    %164 = tpu.matmul %162, %163, %cst_72 {dimension_numbers = #tpu.dot_dimension_numbers<[1], [1], [0], [0], [0, 0, 1, 0], [], []>} : vector<8x8xbf16>, vector<8x8xbf16>, vector<8x8xf32> -> vector<8x8xf32>
    %cst_73 = arith.constant -1.000000e+30 : f32
    %165 = vector.broadcast %cst_73 : f32 to vector<8x8xf32>
    %166 = arith.select %31, %164, %165 : vector<8x8xi1>, vector<8x8xf32>
    %cst_74 = arith.constant dense<0xFF800000> : vector<8xf32>
    %167 = vector.multi_reduction <maximumf>, %166, %cst_74 [1] : vector<8x8xf32> to vector<8xf32>
    %168 = vector.shape_cast %167 : vector<8xf32> to vector<8x1xf32>
    %169 = vector.broadcast %168 : vector<8x1xf32> to vector<8x8xf32>
    %170 = arith.subf %166, %169 : vector<8x8xf32>
    %171 = math.exp %170 : vector<8x8xf32>
    %cst_75 = arith.constant dense<0.000000e+00> : vector<8xf32>
    %172 = vector.multi_reduction <add>, %171, %cst_75 [1] : vector<8x8xf32> to vector<8xf32>
    %173 = vector.shape_cast %172 : vector<8xf32> to vector<8x1xf32>
    %174 = tpu.reciprocal %173 {approx = true} : vector<8x1xf32> -> vector<8x1xf32>
    %175 = vector.broadcast %174 : vector<8x1xf32> to vector<8x8xf32>
    %176 = arith.mulf %171, %175 : vector<8x8xf32>
    %177 = arith.truncf %176 : vector<8x8xf32> to vector<8x8xbf16>
    %178 = arith.truncf %161 : vector<8x8xf32> to vector<8x8xbf16>
    %cst_76 = arith.constant dense<0.000000e+00> : vector<8x8xf32>
    %179 = tpu.matmul %177, %178, %cst_76 {dimension_numbers = #tpu.dot_dimension_numbers<[1], [0], [0], [1], [0, 0, 1, 1], [], []>} : vector<8x8xbf16>, vector<8x8xbf16>, vector<8x8xf32> -> vector<8x8xf32>
    %180 = arith.truncf %179 : vector<8x8xf32> to vector<8x8xbf16>
    %181 = arith.index_cast %c2_i32 : i32 to index
    %c0_77 = arith.constant 0 : index
    %c0_78 = arith.constant 0 : index
    %182 = vector.load %arg10[%181, %c0_77, %c0_78] : memref<4x8x32xbf16, #tpu.memory_space<vmem>>, vector<1x8x32xbf16>
    %183 = vector.shape_cast %182 : vector<1x8x32xbf16> to vector<8x32xbf16>
    %cst_79 = arith.constant dense<0.000000e+00> : vector<8x32xf32>
    %184 = tpu.matmul %180, %183, %cst_79 {dimension_numbers = #tpu.dot_dimension_numbers<[1], [0], [0], [1], [0, 0, 1, 1], [], []>} : vector<8x8xbf16>, vector<8x32xbf16>, vector<8x32xf32> -> vector<8x32xf32>
    %185 = arith.addf %134, %184 : vector<8x32xf32>
    %c3_i32 = arith.constant 3 : i32
    %186 = arith.index_cast %c3_i32 : i32 to index
    %c0_80 = arith.constant 0 : index
    %c0_81 = arith.constant 0 : index
    %187 = vector.load %arg4[%186, %c0_80, %c0_81] : memref<4x32x8xbf16, #tpu.memory_space<vmem>>, vector<1x32x8xbf16>
    %188 = vector.shape_cast %187 : vector<1x32x8xbf16> to vector<32x8xbf16>
    %cst_82 = arith.constant dense<0.000000e+00> : vector<8x8xf32>
    %189 = tpu.matmul %28, %188, %cst_82 {dimension_numbers = #tpu.dot_dimension_numbers<[1], [0], [0], [1], [0, 0, 1, 1], [], []>} : vector<8x32xbf16>, vector<32x8xbf16>, vector<8x8xf32> -> vector<8x8xf32>
    %190 = arith.index_cast %c3_i32 : i32 to index
    %c0_83 = arith.constant 0 : index
    %c0_84 = arith.constant 0 : index
    %191 = vector.load %arg5[%190, %c0_83, %c0_84] : memref<4x1x8xf32, #tpu.memory_space<vmem>>, vector<1x1x8xf32>
    %192 = vector.shape_cast %191 : vector<1x1x8xf32> to vector<1x8xf32>
    %193 = vector.broadcast %192 : vector<1x8xf32> to vector<8x8xf32>
    %194 = arith.addf %189, %193 : vector<8x8xf32>
    %195 = arith.index_cast %c3_i32 : i32 to index
    %c0_85 = arith.constant 0 : index
    %c0_86 = arith.constant 0 : index
    %196 = vector.load %arg6[%195, %c0_85, %c0_86] : memref<4x32x8xbf16, #tpu.memory_space<vmem>>, vector<1x32x8xbf16>
    %197 = vector.shape_cast %196 : vector<1x32x8xbf16> to vector<32x8xbf16>
    %cst_87 = arith.constant dense<0.000000e+00> : vector<8x8xf32>
    %198 = tpu.matmul %28, %197, %cst_87 {dimension_numbers = #tpu.dot_dimension_numbers<[1], [0], [0], [1], [0, 0, 1, 1], [], []>} : vector<8x32xbf16>, vector<32x8xbf16>, vector<8x8xf32> -> vector<8x8xf32>
    %199 = arith.index_cast %c3_i32 : i32 to index
    %c0_88 = arith.constant 0 : index
    %c0_89 = arith.constant 0 : index
    %200 = vector.load %arg7[%199, %c0_88, %c0_89] : memref<4x1x8xf32, #tpu.memory_space<vmem>>, vector<1x1x8xf32>
    %201 = vector.shape_cast %200 : vector<1x1x8xf32> to vector<1x8xf32>
    %202 = vector.broadcast %201 : vector<1x8xf32> to vector<8x8xf32>
    %203 = arith.addf %198, %202 : vector<8x8xf32>
    %204 = arith.index_cast %c3_i32 : i32 to index
    %c0_90 = arith.constant 0 : index
    %c0_91 = arith.constant 0 : index
    %205 = vector.load %arg8[%204, %c0_90, %c0_91] : memref<4x32x8xbf16, #tpu.memory_space<vmem>>, vector<1x32x8xbf16>
    %206 = vector.shape_cast %205 : vector<1x32x8xbf16> to vector<32x8xbf16>
    %cst_92 = arith.constant dense<0.000000e+00> : vector<8x8xf32>
    %207 = tpu.matmul %28, %206, %cst_92 {dimension_numbers = #tpu.dot_dimension_numbers<[1], [0], [0], [1], [0, 0, 1, 1], [], []>} : vector<8x32xbf16>, vector<32x8xbf16>, vector<8x8xf32> -> vector<8x8xf32>
    %208 = arith.index_cast %c3_i32 : i32 to index
    %c0_93 = arith.constant 0 : index
    %c0_94 = arith.constant 0 : index
    %209 = vector.load %arg9[%208, %c0_93, %c0_94] : memref<4x1x8xf32, #tpu.memory_space<vmem>>, vector<1x1x8xf32>
    %210 = vector.shape_cast %209 : vector<1x1x8xf32> to vector<1x8xf32>
    %211 = vector.broadcast %210 : vector<1x8xf32> to vector<8x8xf32>
    %212 = arith.addf %207, %211 : vector<8x8xf32>
    %213 = arith.truncf %194 : vector<8x8xf32> to vector<8x8xbf16>
    %214 = arith.truncf %203 : vector<8x8xf32> to vector<8x8xbf16>
    %cst_95 = arith.constant dense<0.000000e+00> : vector<8x8xf32>
    %215 = tpu.matmul %213, %214, %cst_95 {dimension_numbers = #tpu.dot_dimension_numbers<[1], [1], [0], [0], [0, 0, 1, 0], [], []>} : vector<8x8xbf16>, vector<8x8xbf16>, vector<8x8xf32> -> vector<8x8xf32>
    %cst_96 = arith.constant -1.000000e+30 : f32
    %216 = vector.broadcast %cst_96 : f32 to vector<8x8xf32>
    %217 = arith.select %31, %215, %216 : vector<8x8xi1>, vector<8x8xf32>
    %cst_97 = arith.constant dense<0xFF800000> : vector<8xf32>
    %218 = vector.multi_reduction <maximumf>, %217, %cst_97 [1] : vector<8x8xf32> to vector<8xf32>
    %219 = vector.shape_cast %218 : vector<8xf32> to vector<8x1xf32>
    %220 = vector.broadcast %219 : vector<8x1xf32> to vector<8x8xf32>
    %221 = arith.subf %217, %220 : vector<8x8xf32>
    %222 = math.exp %221 : vector<8x8xf32>
    %cst_98 = arith.constant dense<0.000000e+00> : vector<8xf32>
    %223 = vector.multi_reduction <add>, %222, %cst_98 [1] : vector<8x8xf32> to vector<8xf32>
    %224 = vector.shape_cast %223 : vector<8xf32> to vector<8x1xf32>
    %225 = tpu.reciprocal %224 {approx = true} : vector<8x1xf32> -> vector<8x1xf32>
    %226 = vector.broadcast %225 : vector<8x1xf32> to vector<8x8xf32>
    %227 = arith.mulf %222, %226 : vector<8x8xf32>
    %228 = arith.truncf %227 : vector<8x8xf32> to vector<8x8xbf16>
    %229 = arith.truncf %212 : vector<8x8xf32> to vector<8x8xbf16>
    %cst_99 = arith.constant dense<0.000000e+00> : vector<8x8xf32>
    %230 = tpu.matmul %228, %229, %cst_99 {dimension_numbers = #tpu.dot_dimension_numbers<[1], [0], [0], [1], [0, 0, 1, 1], [], []>} : vector<8x8xbf16>, vector<8x8xbf16>, vector<8x8xf32> -> vector<8x8xf32>
    %231 = arith.truncf %230 : vector<8x8xf32> to vector<8x8xbf16>
    %232 = arith.index_cast %c3_i32 : i32 to index
    %c0_100 = arith.constant 0 : index
    %c0_101 = arith.constant 0 : index
    %233 = vector.load %arg10[%232, %c0_100, %c0_101] : memref<4x8x32xbf16, #tpu.memory_space<vmem>>, vector<1x8x32xbf16>
    %234 = vector.shape_cast %233 : vector<1x8x32xbf16> to vector<8x32xbf16>
    %cst_102 = arith.constant dense<0.000000e+00> : vector<8x32xf32>
    %235 = tpu.matmul %231, %234, %cst_102 {dimension_numbers = #tpu.dot_dimension_numbers<[1], [0], [0], [1], [0, 0, 1, 1], [], []>} : vector<8x8xbf16>, vector<8x32xbf16>, vector<8x32xf32> -> vector<8x32xf32>
    %236 = arith.addf %185, %235 : vector<8x32xf32>
    %c4_i32 = arith.constant 4 : i32
    %c0_103 = arith.constant 0 : index
    %c0_104 = arith.constant 0 : index
    %237 = vector.load %arg11[%c0_103, %c0_104] : memref<1x32xf32, #tpu.memory_space<vmem>>, vector<1x32xf32>
    %238 = vector.broadcast %237 : vector<1x32xf32> to vector<8x32xf32>
    %239 = arith.addf %236, %238 : vector<8x32xf32>
    %240 = arith.addf %1, %239 : vector<8x32xf32>
    %c0_105 = arith.constant 0 : index
    %c0_106 = arith.constant 0 : index
    %241 = vector.load %arg12[%c0_105, %c0_106] : memref<1x32xf32, #tpu.memory_space<vmem>>, vector<1x32xf32>
    %c0_107 = arith.constant 0 : index
    %c0_108 = arith.constant 0 : index
    %242 = vector.load %arg13[%c0_107, %c0_108] : memref<1x32xf32, #tpu.memory_space<vmem>>, vector<1x32xf32>
    %cst_109 = arith.constant dense<0.000000e+00> : vector<8xf32>
    %243 = vector.multi_reduction <add>, %240, %cst_109 [1] : vector<8x32xf32> to vector<8xf32>
    %244 = vector.shape_cast %243 : vector<8xf32> to vector<8x1xf32>
    %cst_110 = arith.constant 3.200000e+01 : f32
    %245 = vector.broadcast %cst_110 : f32 to vector<8x1xf32>
    %246 = arith.divf %244, %245 : vector<8x1xf32>
    %247 = vector.broadcast %246 : vector<8x1xf32> to vector<8x32xf32>
    %248 = arith.subf %240, %247 : vector<8x32xf32>
    %249 = vector.broadcast %246 : vector<8x1xf32> to vector<8x32xf32>
    %250 = arith.subf %240, %249 : vector<8x32xf32>
    %251 = arith.mulf %248, %250 : vector<8x32xf32>
    %cst_111 = arith.constant dense<0.000000e+00> : vector<8xf32>
    %252 = vector.multi_reduction <add>, %251, %cst_111 [1] : vector<8x32xf32> to vector<8xf32>
    %253 = vector.shape_cast %252 : vector<8xf32> to vector<8x1xf32>
    %cst_112 = arith.constant 3.200000e+01 : f32
    %254 = vector.broadcast %cst_112 : f32 to vector<8x1xf32>
    %255 = arith.divf %253, %254 : vector<8x1xf32>
    %256 = vector.broadcast %246 : vector<8x1xf32> to vector<8x32xf32>
    %257 = arith.subf %240, %256 : vector<8x32xf32>
    %cst_113 = arith.constant 9.99999974E-6 : f32
    %258 = vector.broadcast %cst_113 : f32 to vector<8x1xf32>
    %259 = arith.addf %255, %258 : vector<8x1xf32>
    %260 = math.rsqrt %259 : vector<8x1xf32>
    %261 = vector.broadcast %260 : vector<8x1xf32> to vector<8x32xf32>
    %262 = arith.mulf %257, %261 : vector<8x32xf32>
    %263 = vector.broadcast %241 : vector<1x32xf32> to vector<8x32xf32>
    %264 = arith.mulf %262, %263 : vector<8x32xf32>
    %265 = vector.broadcast %242 : vector<1x32xf32> to vector<8x32xf32>
    %266 = arith.addf %264, %265 : vector<8x32xf32>
    %267 = arith.truncf %266 : vector<8x32xf32> to vector<8x32xbf16>
    %c0_114 = arith.constant 0 : index
    %c0_115 = arith.constant 0 : index
    %268 = vector.load %arg14[%c0_114, %c0_115] : memref<32x128xbf16, #tpu.memory_space<vmem>>, vector<32x128xbf16>
    %cst_116 = arith.constant dense<0.000000e+00> : vector<8x128xf32>
    %269 = tpu.matmul %267, %268, %cst_116 {dimension_numbers = #tpu.dot_dimension_numbers<[1], [0], [0], [1], [0, 0, 1, 1], [], []>} : vector<8x32xbf16>, vector<32x128xbf16>, vector<8x128xf32> -> vector<8x128xf32>
    %c0_117 = arith.constant 0 : index
    %c0_118 = arith.constant 0 : index
    %270 = vector.load %arg15[%c0_117, %c0_118] : memref<1x128xf32, #tpu.memory_space<vmem>>, vector<1x128xf32>
    %271 = vector.broadcast %270 : vector<1x128xf32> to vector<8x128xf32>
    %272 = arith.addf %269, %271 : vector<8x128xf32>
    %cst_119 = arith.constant 1.702000e+00 : f32
    %273 = vector.broadcast %cst_119 : f32 to vector<8x128xf32>
    %274 = arith.mulf %273, %272 : vector<8x128xf32>
    %275 = arith.negf %274 : vector<8x128xf32>
    %276 = math.exp %275 : vector<8x128xf32>
    %cst_120 = arith.constant 1.000000e+00 : f32
    %277 = vector.broadcast %cst_120 : f32 to vector<8x128xf32>
    %278 = arith.addf %277, %276 : vector<8x128xf32>
    %279 = arith.divf %277, %278 : vector<8x128xf32>
    %280 = arith.mulf %272, %279 : vector<8x128xf32>
    %281 = arith.truncf %280 : vector<8x128xf32> to vector<8x128xbf16>
    %c0_121 = arith.constant 0 : index
    %c0_122 = arith.constant 0 : index
    %282 = vector.load %arg16[%c0_121, %c0_122] : memref<128x32xbf16, #tpu.memory_space<vmem>>, vector<128x32xbf16>
    %cst_123 = arith.constant dense<0.000000e+00> : vector<8x32xf32>
    %283 = tpu.matmul %281, %282, %cst_123 {dimension_numbers = #tpu.dot_dimension_numbers<[1], [0], [0], [1], [0, 0, 1, 1], [], []>} : vector<8x128xbf16>, vector<128x32xbf16>, vector<8x32xf32> -> vector<8x32xf32>
    %c0_124 = arith.constant 0 : index
    %c0_125 = arith.constant 0 : index
    %284 = vector.load %arg17[%c0_124, %c0_125] : memref<1x32xf32, #tpu.memory_space<vmem>>, vector<1x32xf32>
    %285 = vector.broadcast %284 : vector<1x32xf32> to vector<8x32xf32>
    %286 = arith.addf %283, %285 : vector<8x32xf32>
    %287 = arith.addf %240, %286 : vector<8x32xf32>
    %c0_126 = arith.constant 0 : index
    %c0_127 = arith.constant 0 : index
    %c0_128 = arith.constant 0 : index
    %288 = vector.load %arg18[%c0_126, %c0_127, %c0_128] : memref<1x8x32xf32, #tpu.memory_space<vmem>>, vector<1x8x32xf32>
    %289 = vector.shape_cast %288 : vector<1x8x32xf32> to vector<8x32xf32>
    %290 = vector.shape_cast %287 : vector<8x32xf32> to vector<1x8x32xf32>
    tpu.vector_store %arg18[%c0_126, %c0_127, %c0_128], %290 {strides = array<i32>} : memref<1x8x32xf32, #tpu.memory_space<vmem>>, vector<1x8x32xf32>,
    return
  }
  func.func @transform_0(%arg0: i32) -> (i32, i32, i32) {
    %c0_i32 = arith.constant 0 : i32
    %c0_i32_0 = arith.constant 0 : i32
    %c0_i32_1 = arith.constant 0 : i32
    return %arg0, %c0_i32, %c0_i32_0 : i32, i32, i32
  }
  func.func @transform_1(%arg0: i32) -> (i32, i32) {
    %c0_i32 = arith.constant 0 : i32
    %c0_i32_0 = arith.constant 0 : i32
    %c0_i32_1 = arith.constant 0 : i32
    return %c0_i32, %c0_i32_0 : i32, i32
  }
  func.func @transform_2(%arg0: i32) -> (i32, i32) {
    %c0_i32 = arith.constant 0 : i32
    %c0_i32_0 = arith.constant 0 : i32
    %c0_i32_1 = arith.constant 0 : i32
    return %c0_i32, %c0_i32_0 : i32, i32
  }
  func.func @transform_3(%arg0: i32) -> (i32, i32, i32) {
    %c0_i32 = arith.constant 0 : i32
    %c0_i32_0 = arith.constant 0 : i32
    %c0_i32_1 = arith.constant 0 : i32
    %c0_i32_2 = arith.constant 0 : i32
    return %c0_i32, %c0_i32_0, %c0_i32_1 : i32, i32, i32
  }
  func.func @transform_4(%arg0: i32) -> (i32, i32, i32) {
    %c0_i32 = arith.constant 0 : i32
    %c0_i32_0 = arith.constant 0 : i32
    %c0_i32_1 = arith.constant 0 : i32
    %c0_i32_2 = arith.constant 0 : i32
    return %c0_i32, %c0_i32_0, %c0_i32_1 : i32, i32, i32
  }
  func.func @transform_5(%arg0: i32) -> (i32, i32, i32) {
    %c0_i32 = arith.constant 0 : i32
    %c0_i32_0 = arith.constant 0 : i32
    %c0_i32_1 = arith.constant 0 : i32
    %c0_i32_2 = arith.constant 0 : i32
    return %c0_i32, %c0_i32_0, %c0_i32_1 : i32, i32, i32
  }
  func.func @transform_6(%arg0: i32) -> (i32, i32, i32) {
    %c0_i32 = arith.constant 0 : i32
    %c0_i32_0 = arith.constant 0 : i32
    %c0_i32_1 = arith.constant 0 : i32
    %c0_i32_2 = arith.constant 0 : i32
    return %c0_i32, %c0_i32_0, %c0_i32_1 : i32, i32, i32
  }
  func.func @transform_7(%arg0: i32) -> (i32, i32, i32) {
    %c0_i32 = arith.constant 0 : i32
    %c0_i32_0 = arith.constant 0 : i32
    %c0_i32_1 = arith.constant 0 : i32
    %c0_i32_2 = arith.constant 0 : i32
    return %c0_i32, %c0_i32_0, %c0_i32_1 : i32, i32, i32
  }
  func.func @transform_8(%arg0: i32) -> (i32, i32, i32) {
    %c0_i32 = arith.constant 0 : i32
    %c0_i32_0 = arith.constant 0 : i32
    %c0_i32_1 = arith.constant 0 : i32
    %c0_i32_2 = arith.constant 0 : i32
    return %c0_i32, %c0_i32_0, %c0_i32_1 : i32, i32, i32
  }
  func.func @transform_9(%arg0: i32) -> (i32, i32, i32) {
    %c0_i32 = arith.constant 0 : i32
    %c0_i32_0 = arith.constant 0 : i32
    %c0_i32_1 = arith.constant 0 : i32
    %c0_i32_2 = arith.constant 0 : i32
    return %c0_i32, %c0_i32_0, %c0_i32_1 : i32, i32, i32
  }
  func.func @transform_10(%arg0: i32) -> (i32, i32) {
    %c0_i32 = arith.constant 0 : i32
    %c0_i32_0 = arith.constant 0 : i32
    %c0_i32_1 = arith.constant 0 : i32
    return %c0_i32, %c0_i32_0 : i32, i32
  }
  func.func @transform_11(%arg0: i32) -> (i32, i32) {
    %c0_i32 = arith.constant 0 : i32
    %c0_i32_0 = arith.constant 0 : i32
    %c0_i32_1 = arith.constant 0 : i32
    return %c0_i32, %c0_i32_0 : i32, i32
  }
  func.func @transform_12(%arg0: i32) -> (i32, i32) {
    %c0_i32 = arith.constant 0 : i32
    %c0_i32_0 = arith.constant 0 : i32
    %c0_i32_1 = arith.constant 0 : i32
    return %c0_i32, %c0_i32_0 : i32, i32
  }
  func.func @transform_13(%arg0: i32) -> (i32, i32) {
    %c0_i32 = arith.constant 0 : i32
    %c0_i32_0 = arith.constant 0 : i32
    %c0_i32_1 = arith.constant 0 : i32
    return %c0_i32, %c0_i32_0 : i32, i32
  }
  func.func @transform_14(%arg0: i32) -> (i32, i32) {
    %c0_i32 = arith.constant 0 : i32
    %c0_i32_0 = arith.constant 0 : i32
    %c0_i32_1 = arith.constant 0 : i32
    return %c0_i32, %c0_i32_0 : i32, i32
  }
  func.func @transform_15(%arg0: i32) -> (i32, i32) {
    %c0_i32 = arith.constant 0 : i32
    %c0_i32_0 = arith.constant 0 : i32
    %c0_i32_1 = arith.constant 0 : i32
    return %c0_i32, %c0_i32_0 : i32, i32
  }
  func.func @transform_16(%arg0: i32) -> (i32, i32) {
    %c0_i32 = arith.constant 0 : i32
    %c0_i32_0 = arith.constant 0 : i32
    %c0_i32_1 = arith.constant 0 : i32
    return %c0_i32, %c0_i32_0 : i32, i32
  }
  func.func @transform_17(%arg0: i32) -> (i32, i32, i32) {
    %c0_i32 = arith.constant 0 : i32
    %c0_i32_0 = arith.constant 0 : i32
    %c0_i32_1 = arith.constant 0 : i32
    return %arg0, %c0_i32, %c0_i32_0 : i32, i32, i32
  }
}

</mosaic_0001>

<llo_original>
// kernel: tpu_custom_call.1
$region0: #{tpu_custom_call.1}
  #allocation0 [shape = 'u32[]', space=smem, size = 0x4, offset = 0x4, fixed_abs, tag = 'smem constant byte address 0x4 - core index']
  #allocation1 [shape = 'u32[144,128]{1,0:T(1,128)}', space=vmem, size = 0x12000, scoped, tag = 'internal scratch']
  %s0 = inlined_call_operand.vmem [shape: f32[2,8,32], index: 0, kind: input, shape index: {}]
  %s1 = inlined_call_operand.vmem [shape: f32[1,32], index: 1, kind: input, shape index: {}]
  %s2 = inlined_call_operand.vmem [shape: f32[1,32], index: 2, kind: input, shape index: {}]
  %s3 = inlined_call_operand.vmem [shape: bf16[4,32,8], index: 3, kind: input, shape index: {}]
  %s4 = inlined_call_operand.vmem [shape: f32[4,1,8], index: 4, kind: input, shape index: {}]
  %s5 = inlined_call_operand.vmem [shape: bf16[4,32,8], index: 5, kind: input, shape index: {}]
  %s6 = inlined_call_operand.vmem [shape: f32[4,1,8], index: 6, kind: input, shape index: {}]
  %s7 = inlined_call_operand.vmem [shape: bf16[4,32,8], index: 7, kind: input, shape index: {}]
  %s8 = inlined_call_operand.vmem [shape: f32[4,1,8], index: 8, kind: input, shape index: {}]
  %s9 = inlined_call_operand.vmem [shape: bf16[4,8,32], index: 9, kind: input, shape index: {}]
  %s10 = inlined_call_operand.vmem [shape: f32[1,32], index: 10, kind: input, shape index: {}]
  %s11 = inlined_call_operand.vmem [shape: f32[1,32], index: 11, kind: input, shape index: {}]
  %s12 = inlined_call_operand.vmem [shape: f32[1,32], index: 12, kind: input, shape index: {}]
  %s13 = inlined_call_operand.vmem [shape: bf16[32,128], index: 13, kind: input, shape index: {}]
  %s14 = inlined_call_operand.vmem [shape: f32[1,128], index: 14, kind: input, shape index: {}]
  %s15 = inlined_call_operand.vmem [shape: bf16[128,32], index: 15, kind: input, shape index: {}]
  %s16 = inlined_call_operand.vmem [shape: f32[1,32], index: 16, kind: input, shape index: {}]
  %s17 = inlined_call_operand.hbm [shape: f32[2,8,32], index: 17, kind: output, shape index: {}]
  %s18 = sld [smem:[#allocation0]]
  $region101: #{tpu_custom_call.1} parent=0
    _
  %s20 = ssub.s32 1, %s18
  %s21 = scalar_select 0, %s20, %s18
  $region1: #{tpu_custom_call.1} parent=0
    #allocation2 [shape = 'u8[8192]{0}', space=vmem, size = 0x2000, scoped, tag = 'output window, operand 0']
    #allocation3 [shape = 's32[2]{0}', space=sflag, size = 0x8, scoped, tag = 'scoped memory for tpu_custom_call.1']
    %22 = vsyncpa [#allocation3], 0
    %s23 = scalar_lea.sflag [#allocation3], 1
    %24 = vsyncpa %s23, 0
    loop: start=0, step=1, limit=4
    $region2: #{tpu_custom_call.1} parent=1 // loop_pre_header
      _
    $region3: #{tpu_custom_call.1} parent=1 // loop_header
      %s26 = sphi 0, %s30
      %p27 = scmp.ge.s32.totalorder %s26, 4
      %s36 = sphi 0, %s38
      %s39 = sphi 0, %s36
      %s40 = sphi 0, %s39
      %s56 = sphi 0, %s40
      %s60 = sphi 0, %s60
      %s62 = sphi 0, %s60
      %s63 = sphi 0, %s62
      %s77 = sphi 0, %s63
      %s81 = sphi 0, %s81
      %s83 = sphi 0, %s81
      %s84 = sphi 0, %s83
      %s98 = sphi 0, %s84
      %s102 = sphi 0, %s102
      %s104 = sphi 0, %s102
      %s105 = sphi 0, %s104
      %s119 = sphi 0, %s105
      %s123 = sphi 0, %s123
      %s125 = sphi 0, %s123
      %s126 = sphi 0, %s125
      %s140 = sphi 0, %s126
      %s144 = sphi 0, %s144
      %s146 = sphi 0, %s144
      %s147 = sphi 0, %s146
      %s161 = sphi 0, %s147
      %s165 = sphi 0, %s165
      %s167 = sphi 0, %s165
      %s168 = sphi 0, %s167
      %s182 = sphi 0, %s168
      %s186 = sphi 0, %s186
      %s188 = sphi 0, %s186
      %s189 = sphi 0, %s188
      %s203 = sphi 0, %s189
      %s207 = sphi 0, %s207
      %s209 = sphi 0, %s207
      %s210 = sphi 0, %s209
      %s224 = sphi 0, %s210
      %s228 = sphi 0, %s228
      %s230 = sphi 0, %s228
      %s231 = sphi 0, %s230
      %s245 = sphi 0, %s231
      %s249 = sphi 0, %s249
      %s251 = sphi 0, %s249
      %s252 = sphi 0, %s251
      %s266 = sphi 0, %s252
      %s270 = sphi 0, %s270
      %s272 = sphi 0, %s270
      %s273 = sphi 0, %s272
      %s287 = sphi 0, %s273
      %s291 = sphi 0, %s291
      %s293 = sphi 0, %s291
      %s294 = sphi 0, %s293
      %s308 = sphi 0, %s294
      %s312 = sphi 0, %s312
      %s314 = sphi 0, %s312
      %s315 = sphi 0, %s314
      %s329 = sphi 0, %s315
      %s333 = sphi 0, %s333
      %s335 = sphi 0, %s333
      %s336 = sphi 0, %s335
      %s350 = sphi 0, %s336
      %s354 = sphi 0, %s354
      %s356 = sphi 0, %s354
      %s357 = sphi 0, %s356
      %s371 = sphi 0, %s357
      %s375 = sphi 0, %s375
      %s377 = sphi 0, %s375
      %s378 = sphi 0, %s377
      %s392 = sphi 0, %s378
      %s398 = sphi 0, %s400
      %s401 = sphi 0, %s398
      %s402 = sphi 0, %s401
      %s418 = sphi 0, %s402
    $region4: #{tpu_custom_call.1} parent=1 // loop_header_branch
      %29 = sbr.rel (%p27) target = $region8
    $region5: #{tpu_custom_call.1} parent=1 // loop_body
      %s31 = ssub.s32 %s26, 1
      %s32 = ssub.s32 %s26, 2
      %s33 = sadd.s32 %s26, 1
      %s34 = ssub.s32 %s26, %s33
      %p35 = scmp.eq.s32.totalorder %s34, 0
      %s37 = sadd.s32 %s36, 1
      %s38 = scalar_select %p35, %s36, %s37
      %p41 = pneg %p35
      %p42 = scmp.eq.s32.totalorder %s26, 1
      %p43 = por %p41, %p42
      %p44 = scmp.ne.s32.totalorder %s36, %s39
      %p45 = scmp.eq.s32.totalorder %s26, 0
      %p46 = por %p44, %p45
      %p47 = scmp.ne.s32.totalorder %s36, %s39
      %p48 = scmp.eq.s32.totalorder %s31, 1
      %p49 = por %p47, %p48
      %p50 = scmp.ne.s32.totalorder %s39, %s40
      %p51 = scmp.eq.s32.totalorder %s31, 0
      %p52 = por %p50, %p51
      %p53 = scmp.ne.s32.totalorder %s39, %s40
      %p54 = scmp.eq.s32.totalorder %s32, 1
      %p55 = por %p53, %p54
      %p57 = scmp.ne.s32.totalorder %s40, %s56
      %p58 = scmp.eq.s32.totalorder %s32, 0
      %p59 = por %p57, %p58
      %s61 = sadd.s32 %s60, 1
      %p64 = scmp.eq.s32.totalorder %s26, 1
      %p65 = scmp.ne.s32.totalorder %s60, %s62
      %p66 = scmp.eq.s32.totalorder %s26, 0
      %p67 = por %p65, %p66
      %p68 = scmp.ne.s32.totalorder %s60, %s62
      %p69 = scmp.eq.s32.totalorder %s31, 1
      %p70 = por %p68, %p69
      %p71 = scmp.ne.s32.totalorder %s62, %s63
      %p72 = scmp.eq.s32.totalorder %s31, 0
      %p73 = por %p71, %p72
      %p74 = scmp.ne.s32.totalorder %s62, %s63
      %p75 = scmp.eq.s32.totalorder %s32, 1
      %p76 = por %p74, %p75
      %p78 = scmp.ne.s32.totalorder %s63, %s77
      %p79 = scmp.eq.s32.totalorder %s32, 0
      %p80 = por %p78, %p79
      %s82 = sadd.s32 %s81, 1
      %p85 = scmp.eq.s32.totalorder %s26, 1
      %p86 = scmp.ne.s32.totalorder %s81, %s83
      %p87 = scmp.eq.s32.totalorder %s26, 0
      %p88 = por %p86, %p87
      %p89 = scmp.ne.s32.totalorder %s81, %s83
      %p90 = scmp.eq.s32.totalorder %s31, 1
      %p91 = por %p89, %p90
      %p92 = scmp.ne.s32.totalorder %s83, %s84
      %p93 = scmp.eq.s32.totalorder %s31, 0
      %p94 = por %p92, %p93
      %p95 = scmp.ne.s32.totalorder %s83, %s84
      %p96 = scmp.eq.s32.totalorder %s32, 1
      %p97 = por %p95, %p96
      %p99 = scmp.ne.s32.totalorder %s84, %s98
      %p100 = scmp.eq.s32.totalorder %s32, 0
      %p101 = por %p99, %p100
      %s103 = sadd.s32 %s102, 1
      %p106 = scmp.eq.s32.totalorder %s26, 1
      %p107 = scmp.ne.s32.totalorder %s102, %s104
      %p108 = scmp.eq.s32.totalorder %s26, 0
      %p109 = por %p107, %p108
      %p110 = scmp.ne.s32.totalorder %s102, %s104
      %p111 = scmp.eq.s32.totalorder %s31, 1
      %p112 = por %p110, %p111
      %p113 = scmp.ne.s32.totalorder %s104, %s105
      %p114 = scmp.eq.s32.totalorder %s31, 0
      %p115 = por %p113, %p114
      %p116 = scmp.ne.s32.totalorder %s104, %s105
      %p117 = scmp.eq.s32.totalorder %s32, 1
      %p118 = por %p116, %p117
      %p120 = scmp.ne.s32.totalorder %s105, %s119
      %p121 = scmp.eq.s32.totalorder %s32, 0
      %p122 = por %p120, %p121
      %s124 = sadd.s32 %s123, 1
      %p127 = scmp.eq.s32.totalorder %s26, 1
      %p128 = scmp.ne.s32.totalorder %s123, %s125
      %p129 = scmp.eq.s32.totalorder %s26, 0
      %p130 = por %p128, %p129
      %p131 = scmp.ne.s32.totalorder %s123, %s125
      %p132 = scmp.eq.s32.totalorder %s31, 1
      %p133 = por %p131, %p132
      %p134 = scmp.ne.s32.totalorder %s125, %s126
      %p135 = scmp.eq.s32.totalorder %s31, 0
      %p136 = por %p134, %p135
      %p137 = scmp.ne.s32.totalorder %s125, %s126
      %p138 = scmp.eq.s32.totalorder %s32, 1
      %p139 = por %p137, %p138
      %p141 = scmp.ne.s32.totalorder %s126, %s140
      %p142 = scmp.eq.s32.totalorder %s32, 0
      %p143 = por %p141, %p142
      %s145 = sadd.s32 %s144, 1
      %p148 = scmp.eq.s32.totalorder %s26, 1
      %p149 = scmp.ne.s32.totalorder %s144, %s146
      %p150 = scmp.eq.s32.totalorder %s26, 0
      %p151 = por %p149, %p150
      %p152 = scmp.ne.s32.totalorder %s144, %s146
      %p153 = scmp.eq.s32.totalorder %s31, 1
      %p154 = por %p152, %p153
      %p155 = scmp.ne.s32.totalorder %s146, %s147
      %p156 = scmp.eq.s32.totalorder %s31, 0
      %p157 = por %p155, %p156
      %p158 = scmp.ne.s32.totalorder %s146, %s147
      %p159 = scmp.eq.s32.totalorder %s32, 1
      %p160 = por %p158, %p159
      %p162 = scmp.ne.s32.totalorder %s147, %s161
      %p163 = scmp.eq.s32.totalorder %s32, 0
      %p164 = por %p162, %p163
      %s166 = sadd.s32 %s165, 1
      %p169 = scmp.eq.s32.totalorder %s26, 1
      %p170 = scmp.ne.s32.totalorder %s165, %s167
      %p171 = scmp.eq.s32.totalorder %s26, 0
      %p172 = por %p170, %p171
      %p173 = scmp.ne.s32.totalorder %s165, %s167
      %p174 = scmp.eq.s32.totalorder %s31, 1
      %p175 = por %p173, %p174
      %p176 = scmp.ne.s32.totalorder %s167, %s168
      %p177 = scmp.eq.s32.totalorder %s31, 0
      %p178 = por %p176, %p177
      %p179 = scmp.ne.s32.totalorder %s167, %s168
      %p180 = scmp.eq.s32.totalorder %s32, 1
      %p181 = por %p179, %p180
      %p183 = scmp.ne.s32.totalorder %s168, %s182
      %p184 = scmp.eq.s32.totalorder %s32, 0
      %p185 = por %p183, %p184
      %s187 = sadd.s32 %s186, 1
      %p190 = scmp.eq.s32.totalorder %s26, 1
      %p191 = scmp.ne.s32.totalorder %s186, %s188
      %p192 = scmp.eq.s32.totalorder %s26, 0
      %p193 = por %p191, %p192
      %p194 = scmp.ne.s32.totalorder %s186, %s188
      %p195 = scmp.eq.s32.totalorder %s31, 1
      %p196 = por %p194, %p195
      %p197 = scmp.ne.s32.totalorder %s188, %s189
      %p198 = scmp.eq.s32.totalorder %s31, 0
      %p199 = por %p197, %p198
      %p200 = scmp.ne.s32.totalorder %s188, %s189
      %p201 = scmp.eq.s32.totalorder %s32, 1
      %p202 = por %p200, %p201
      %p204 = scmp.ne.s32.totalorder %s189, %s203
      %p205 = scmp.eq.s32.totalorder %s32, 0
      %p206 = por %p204, %p205
      %s208 = sadd.s32 %s207, 1
      %p211 = scmp.eq.s32.totalorder %s26, 1
      %p212 = scmp.ne.s32.totalorder %s207, %s209
      %p213 = scmp.eq.s32.totalorder %s26, 0
      %p214 = por %p212, %p213
      %p215 = scmp.ne.s32.totalorder %s207, %s209
      %p216 = scmp.eq.s32.totalorder %s31, 1
      %p217 = por %p215, %p216
      %p218 = scmp.ne.s32.totalorder %s209, %s210
      %p219 = scmp.eq.s32.totalorder %s31, 0
      %p220 = por %p218, %p219
      %p221 = scmp.ne.s32.totalorder %s209, %s210
      %p222 = scmp.eq.s32.totalorder %s32, 1
      %p223 = por %p221, %p222
      %p225 = scmp.ne.s32.totalorder %s210, %s224
      %p226 = scmp.eq.s32.totalorder %s32, 0
      %p227 = por %p225, %p226
      %s229 = sadd.s32 %s228, 1
      %p232 = scmp.eq.s32.totalorder %s26, 1
      %p233 = scmp.ne.s32.totalorder %s228, %s230
      %p234 = scmp.eq.s32.totalorder %s26, 0
      %p235 = por %p233, %p234
      %p236 = scmp.ne.s32.totalorder %s228, %s230
      %p237 = scmp.eq.s32.totalorder %s31, 1
      %p238 = por %p236, %p237
      %p239 = scmp.ne.s32.totalorder %s230, %s231
      %p240 = scmp.eq.s32.totalorder %s31, 0
      %p241 = por %p239, %p240
      %p242 = scmp.ne.s32.totalorder %s230, %s231
      %p243 = scmp.eq.s32.totalorder %s32, 1
      %p244 = por %p242, %p243
      %p246 = scmp.ne.s32.totalorder %s231, %s245
      %p247 = scmp.eq.s32.totalorder %s32, 0
      %p248 = por %p246, %p247
      %s250 = sadd.s32 %s249, 1
      %p253 = scmp.eq.s32.totalorder %s26, 1
      %p254 = scmp.ne.s32.totalorder %s249, %s251
      %p255 = scmp.eq.s32.totalorder %s26, 0
      %p256 = por %p254, %p255
      %p257 = scmp.ne.s32.totalorder %s249, %s251
      %p258 = scmp.eq.s32.totalorder %s31, 1
      %p259 = por %p257, %p258
      %p260 = scmp.ne.s32.totalorder %s251, %s252
      %p261 = scmp.eq.s32.totalorder %s31, 0
      %p262 = por %p260, %p261
      %p263 = scmp.ne.s32.totalorder %s251, %s252
      %p264 = scmp.eq.s32.totalorder %s32, 1
      %p265 = por %p263, %p264
      %p267 = scmp.ne.s32.totalorder %s252, %s266
      %p268 = scmp.eq.s32.totalorder %s32, 0
      %p269 = por %p267, %p268
      %s271 = sadd.s32 %s270, 1
      %p274 = scmp.eq.s32.totalorder %s26, 1
      %p275 = scmp.ne.s32.totalorder %s270, %s272
      %p276 = scmp.eq.s32.totalorder %s26, 0
      %p277 = por %p275, %p276
      %p278 = scmp.ne.s32.totalorder %s270, %s272
      %p279 = scmp.eq.s32.totalorder %s31, 1
      %p280 = por %p278, %p279
      %p281 = scmp.ne.s32.totalorder %s272, %s273
      %p282 = scmp.eq.s32.totalorder %s31, 0
      %p283 = por %p281, %p282
      %p284 = scmp.ne.s32.totalorder %s272, %s273
      %p285 = scmp.eq.s32.totalorder %s32, 1
      %p286 = por %p284, %p285
      %p288 = scmp.ne.s32.totalorder %s273, %s287
      %p289 = scmp.eq.s32.totalorder %s32, 0
      %p290 = por %p288, %p289
      %s292 = sadd.s32 %s291, 1
      %p295 = scmp.eq.s32.totalorder %s26, 1
      %p296 = scmp.ne.s32.totalorder %s291, %s293
      %p297 = scmp.eq.s32.totalorder %s26, 0
      %p298 = por %p296, %p297
      %p299 = scmp.ne.s32.totalorder %s291, %s293
      %p300 = scmp.eq.s32.totalorder %s31, 1
      %p301 = por %p299, %p300
      %p302 = scmp.ne.s32.totalorder %s293, %s294
      %p303 = scmp.eq.s32.totalorder %s31, 0
      %p304 = por %p302, %p303
      %p305 = scmp.ne.s32.totalorder %s293, %s294
      %p306 = scmp.eq.s32.totalorder %s32, 1
      %p307 = por %p305, %p306
      %p309 = scmp.ne.s32.totalorder %s294, %s308
      %p310 = scmp.eq.s32.totalorder %s32, 0
      %p311 = por %p309, %p310
      %s313 = sadd.s32 %s312, 1
      %p316 = scmp.eq.s32.totalorder %s26, 1
      %p317 = scmp.ne.s32.totalorder %s312, %s314
      %p318 = scmp.eq.s32.totalorder %s26, 0
      %p319 = por %p317, %p318
      %p320 = scmp.ne.s32.totalorder %s312, %s314
      %p321 = scmp.eq.s32.totalorder %s31, 1
      %p322 = por %p320, %p321
      %p323 = scmp.ne.s32.totalorder %s314, %s315
      %p324 = scmp.eq.s32.totalorder %s31, 0
      %p325 = por %p323, %p324
      %p326 = scmp.ne.s32.totalorder %s314, %s315
      %p327 = scmp.eq.s32.totalorder %s32, 1
      %p328 = por %p326, %p327
      %p330 = scmp.ne.s32.totalorder %s315, %s329
      %p331 = scmp.eq.s32.totalorder %s32, 0
      %p332 = por %p330, %p331
      %s334 = sadd.s32 %s333, 1
      %p337 = scmp.eq.s32.totalorder %s26, 1
      %p338 = scmp.ne.s32.totalorder %s333, %s335
      %p339 = scmp.eq.s32.totalorder %s26, 0
      %p340 = por %p338, %p339
      %p341 = scmp.ne.s32.totalorder %s333, %s335
      %p342 = scmp.eq.s32.totalorder %s31, 1
      %p343 = por %p341, %p342
      %p344 = scmp.ne.s32.totalorder %s335, %s336
      %p345 = scmp.eq.s32.totalorder %s31, 0
      %p346 = por %p344, %p345
      %p347 = scmp.ne.s32.totalorder %s335, %s336
      %p348 = scmp.eq.s32.totalorder %s32, 1
      %p349 = por %p347, %p348
      %p351 = scmp.ne.s32.totalorder %s336, %s350
      %p352 = scmp.eq.s32.totalorder %s32, 0
      %p353 = por %p351, %p352
      %s355 = sadd.s32 %s354, 1
      %p358 = scmp.eq.s32.totalorder %s26, 1
      %p359 = scmp.ne.s32.totalorder %s354, %s356
      %p360 = scmp.eq.s32.totalorder %s26, 0
      %p361 = por %p359, %p360
      %p362 = scmp.ne.s32.totalorder %s354, %s356
      %p363 = scmp.eq.s32.totalorder %s31, 1
      %p364 = por %p362, %p363
      %p365 = scmp.ne.s32.totalorder %s356, %s357
      %p366 = scmp.eq.s32.totalorder %s31, 0
      %p367 = por %p365, %p366
      %p368 = scmp.ne.s32.totalorder %s356, %s357
      %p369 = scmp.eq.s32.totalorder %s32, 1
      %p370 = por %p368, %p369
      %p372 = scmp.ne.s32.totalorder %s357, %s371
      %p373 = scmp.eq.s32.totalorder %s32, 0
      %p374 = por %p372, %p373
      %s376 = sadd.s32 %s375, 1
      %p379 = scmp.eq.s32.totalorder %s26, 1
      %p380 = scmp.ne.s32.totalorder %s375, %s377
      %p381 = scmp.eq.s32.totalorder %s26, 0
      %p382 = por %p380, %p381
      %p383 = scmp.ne.s32.totalorder %s375, %s377
      %p384 = scmp.eq.s32.totalorder %s31, 1
      %p385 = por %p383, %p384
      %p386 = scmp.ne.s32.totalorder %s377, %s378
      %p387 = scmp.eq.s32.totalorder %s31, 0
      %p388 = por %p386, %p387
      %p389 = scmp.ne.s32.totalorder %s377, %s378
      %p390 = scmp.eq.s32.totalorder %s32, 1
      %p391 = por %p389, %p390
      %p393 = scmp.ne.s32.totalorder %s378, %s392
      %p394 = scmp.eq.s32.totalorder %s32, 0
      %p395 = por %p393, %p394
      %s396 = ssub.s32 %s26, %s33
      %p397 = scmp.eq.s32.totalorder %s396, 0
      %s399 = sadd.s32 %s398, 1
      %s400 = scalar_select %p397, %s398, %s399
      %p403 = pneg %p397
      %p404 = scmp.eq.s32.totalorder %s26, 1
      %p405 = por %p403, %p404
      %p406 = scmp.ne.s32.totalorder %s398, %s401
      %p407 = scmp.eq.s32.totalorder %s26, 0
      %p408 = por %p406, %p407
      %p409 = scmp.ne.s32.totalorder %s398, %s401
      %p410 = scmp.eq.s32.totalorder %s31, 1
      %p411 = por %p409, %p410
      %p412 = scmp.ne.s32.totalorder %s401, %s402
      %p413 = scmp.eq.s32.totalorder %s31, 0
      %p414 = por %p412, %p413
      %p415 = scmp.ne.s32.totalorder %s401, %s402
      %p416 = scmp.eq.s32.totalorder %s32, 1
      %p417 = por %p415, %p416
      %p419 = scmp.ne.s32.totalorder %s402, %s418
      %p420 = scmp.eq.s32.totalorder %s32, 0
      %p421 = por %p419, %p420
      %p422 = scmp.le.s32.totalorder 1, %s26
      %p423 = scmp.lt.s32.totalorder %s26, 3
      %p424 = pnand %p422, %p423
      %p425 = pneg %p424
      // Predicated region
      $region9: #{tpu_custom_call.1} parent=5 // pred_check
        _
      $region10: #{tpu_custom_call.1} parent=5 // pred_check_branch
        %427 = sbr.rel (%p424) target = $region12
      $region11: #{tpu_custom_call.1} parent=5 // pred_region
        %s428 = ssub.s32 %s26, 1
        // Predicated region
        $region13: #{tpu_custom_call.1} parent=11 // pred_check
          %p429 = pneg %p73
        $region14: #{tpu_custom_call.1} parent=11 // pred_check_branch
          %431 = sbr.rel (%p429) target = $region16
        $region15: #{tpu_custom_call.1} parent=11 // pred_region
          _
        $region16: #{tpu_custom_call.1} parent=11 // pred_fallthru
          _
        // Predicated region
        $region17: #{tpu_custom_call.1} parent=11 // pred_check
          %p432 = pneg %p94
        $region18: #{tpu_custom_call.1} parent=11 // pred_check_branch
          %434 = sbr.rel (%p432) target = $region20
        $region19: #{tpu_custom_call.1} parent=11 // pred_region
          _
        $region20: #{tpu_custom_call.1} parent=11 // pred_fallthru
          _
        // Predicated region
        $region21: #{tpu_custom_call.1} parent=11 // pred_check
          %p435 = pneg %p115
        $region22: #{tpu_custom_call.1} parent=11 // pred_check_branch
          %437 = sbr.rel (%p435) target = $region24
        $region23: #{tpu_custom_call.1} parent=11 // pred_region
          _
        $region24: #{tpu_custom_call.1} parent=11 // pred_fallthru
          _
        // Predicated region
        $region25: #{tpu_custom_call.1} parent=11 // pred_check
          %p438 = pneg %p136
        $region26: #{tpu_custom_call.1} parent=11 // pred_check_branch
          %440 = sbr.rel (%p438) target = $region28
        $region27: #{tpu_custom_call.1} parent=11 // pred_region
          _
        $region28: #{tpu_custom_call.1} parent=11 // pred_fallthru
          _
        // Predicated region
        $region29: #{tpu_custom_call.1} parent=11 // pred_check
          %p441 = pneg %p157
        $region30: #{tpu_custom_call.1} parent=11 // pred_check_branch
          %443 = sbr.rel (%p441) target = $region32
        $region31: #{tpu_custom_call.1} parent=11 // pred_region
          _
        $region32: #{tpu_custom_call.1} parent=11 // pred_fallthru
          _
        // Predicated region
        $region33: #{tpu_custom_call.1} parent=11 // pred_check
          %p444 = pneg %p178
        $region34: #{tpu_custom_call.1} parent=11 // pred_check_branch
          %446 = sbr.rel (%p444) target = $region36
        $region35: #{tpu_custom_call.1} parent=11 // pred_region
          _
        $region36: #{tpu_custom_call.1} parent=11 // pred_fallthru
          _
        // Predicated region
        $region37: #{tpu_custom_call.1} parent=11 // pred_check
          %p447 = pneg %p199
        $region38: #{tpu_custom_call.1} parent=11 // pred_check_branch
          %449 = sbr.rel (%p447) target = $region40
        $region39: #{tpu_custom_call.1} parent=11 // pred_region
          _
        $region40: #{tpu_custom_call.1} parent=11 // pred_fallthru
          _
        // Predicated region
        $region41: #{tpu_custom_call.1} parent=11 // pred_check
          %p450 = pneg %p220
        $region42: #{tpu_custom_call.1} parent=11 // pred_check_branch
          %452 = sbr.rel (%p450) target = $region44
        $region43: #{tpu_custom_call.1} parent=11 // pred_region
          _
        $region44: #{tpu_custom_call.1} parent=11 // pred_fallthru
          _
        // Predicated region
        $region45: #{tpu_custom_call.1} parent=11 // pred_check
          %p453 = pneg %p241
        $region46: #{tpu_custom_call.1} parent=11 // pred_check_branch
          %455 = sbr.rel (%p453) target = $region48
        $region47: #{tpu_custom_call.1} parent=11 // pred_region
          _
        $region48: #{tpu_custom_call.1} parent=11 // pred_fallthru
          _
        // Predicated region
        $region49: #{tpu_custom_call.1} parent=11 // pred_check
          %p456 = pneg %p262
        $region50: #{tpu_custom_call.1} parent=11 // pred_check_branch
          %458 = sbr.rel (%p456) target = $region52
        $region51: #{tpu_custom_call.1} parent=11 // pred_region
          _
        $region52: #{tpu_custom_call.1} parent=11 // pred_fallthru
          _
        // Predicated region
        $region53: #{tpu_custom_call.1} parent=11 // pred_check
          %p459 = pneg %p283
        $region54: #{tpu_custom_call.1} parent=11 // pred_check_branch
          %461 = sbr.rel (%p459) target = $region56
        $region55: #{tpu_custom_call.1} parent=11 // pred_region
          _
        $region56: #{tpu_custom_call.1} parent=11 // pred_fallthru
          _
        // Predicated region
        $region57: #{tpu_custom_call.1} parent=11 // pred_check
          %p462 = pneg %p304
        $region58: #{tpu_custom_call.1} parent=11 // pred_check_branch
          %464 = sbr.rel (%p462) target = $region60
        $region59: #{tpu_custom_call.1} parent=11 // pred_region
          _
        $region60: #{tpu_custom_call.1} parent=11 // pred_fallthru
          _
        // Predicated region
        $region61: #{tpu_custom_call.1} parent=11 // pred_check
          %p465 = pneg %p325
        $region62: #{tpu_custom_call.1} parent=11 // pred_check_branch
          %467 = sbr.rel (%p465) target = $region64
        $region63: #{tpu_custom_call.1} parent=11 // pred_region
          _
        $region64: #{tpu_custom_call.1} parent=11 // pred_fallthru
          _
        // Predicated region
        $region65: #{tpu_custom_call.1} parent=11 // pred_check
          %p468 = pneg %p346
        $region66: #{tpu_custom_call.1} parent=11 // pred_check_branch
          %470 = sbr.rel (%p468) target = $region68
        $region67: #{tpu_custom_call.1} parent=11 // pred_region
          _
        $region68: #{tpu_custom_call.1} parent=11 // pred_fallthru
          _
        // Predicated region
        $region69: #{tpu_custom_call.1} parent=11 // pred_check
          %p471 = pneg %p367
        $region70: #{tpu_custom_call.1} parent=11 // pred_check_branch
          %473 = sbr.rel (%p471) target = $region72
        $region71: #{tpu_custom_call.1} parent=11 // pred_region
          _
        $region72: #{tpu_custom_call.1} parent=11 // pred_fallthru
          _
        // Predicated region
        $region73: #{tpu_custom_call.1} parent=11 // pred_check
          %p474 = pneg %p388
        $region74: #{tpu_custom_call.1} parent=11 // pred_check_branch
          %476 = sbr.rel (%p474) target = $region76
        $region75: #{tpu_custom_call.1} parent=11 // pred_region
          _
        $region76: #{tpu_custom_call.1} parent=11 // pred_fallthru
          _
      $region12: #{tpu_custom_call.1} parent=5 // pred_fallthru
        _
      %p477 = scmp.lt.s32.totalorder %s26, 2
      // Predicated region
      $region77: #{tpu_custom_call.1} parent=5 // pred_check
        %p478 = pneg %p477
      $region78: #{tpu_custom_call.1} parent=5 // pred_check_branch
        %480 = sbr.rel (%p478) target = $region80
      $region79: #{tpu_custom_call.1} parent=5 // pred_region
        // Predicated region
        $region81: #{tpu_custom_call.1} parent=79 // pred_check
          %p481 = pneg %p46
        $region82: #{tpu_custom_call.1} parent=79 // pred_check_branch
          %483 = sbr.rel (%p481) target = $region84
        $region83: #{tpu_custom_call.1} parent=79 // pred_region
          %p484 = scmp.lt.s32.totalorder %s26, 1
          %s485 = scalar_select %p484, %s26, 1
          %s486 = smul.addr %s485, 8
          %s487 = scalar_lea.vmem %s0, %s486
        $region84: #{tpu_custom_call.1} parent=79 // pred_fallthru
          _
      $region80: #{tpu_custom_call.1} parent=5 // pred_fallthru
        _
      %p488 = scmp.le.s32.totalorder 1, %s26
      %p489 = scmp.lt.s32.totalorder %s26, 3
      %p490 = pnand %p488, %p489
      %p491 = pneg %p490
      // Predicated region
      $region85: #{tpu_custom_call.1} parent=5 // pred_check
        _
      $region86: #{tpu_custom_call.1} parent=5 // pred_check_branch
        %493 = sbr.rel (%p490) target = $region88
      $region87: #{tpu_custom_call.1} parent=5 // pred_region
        %s494 = ssub.s32 %s26, 1
        %p495 = scmp.lt.s32.totalorder %s31, 1
        %s496 = scalar_select %p495, %s31, 1
        %s497 = smul.addr %s496, 8
        %s498 = scalar_lea.vmem %s0, %s497
        %p499 = pneg %p52
        %p500 = pneg %p49
        %p501 = pneg %p73
        %p502 = pneg %p70
        %p503 = pneg %p94
        %p504 = pneg %p91
        %p505 = pneg %p115
        %p506 = pneg %p112
        %p507 = pneg %p136
        %p508 = pneg %p133
        %p509 = pneg %p157
        %p510 = pneg %p154
        %p511 = pneg %p178
        %p512 = pneg %p175
        %p513 = pneg %p199
        %p514 = pneg %p196
        %p515 = pneg %p220
        %p516 = pneg %p217
        %p517 = pneg %p241
        %p518 = pneg %p238
        %p519 = pneg %p262
        %p520 = pneg %p259
        %p521 = pneg %p283
        %p522 = pneg %p280
        %p523 = pneg %p304
        %p524 = pneg %p301
        %p525 = pneg %p325
        %p526 = pneg %p322
        %p527 = pneg %p346
        %p528 = pneg %p343
        %p529 = pneg %p367
        %p530 = pneg %p364
        %p531 = pneg %p388
        %p532 = pneg %p385
        %p533 = pneg %p414
        %p534 = pneg %p411
        %s535 = sand.u32 %s401, 1
        %s536 = scalar_lea.sflag [#allocation3], %s535
        %s537 = sand.u32 %s401, 1
        %s538 = smul.addr %s537, 8
        %s539 = scalar_lea.vmem [#allocation2], %s538
        %p540 = scmp.lt.s32.totalorder %s31, 1
        %s541 = scalar_select %p540, %s31, 1
        %s542 = smul.addr %s541, 8
        %s543 = scalar_lea.vmem %s0, %s542
        %v545 = vld [vmem:[%s543] sm:$0xff]
        %v546 = vld [vmem:[%s1] sm:$0x1]
        %v547 = vld [vmem:[%s2] sm:$0x1]
        %vm548 = vcmask 261120
        %v549 = vsel %vm548, %v545, 0.0
        %550 = vadd.xlane.f32.xlu0 %v549
        %v551 = vpop.xlane.xlu0 %550
        %v552 = vrcp.pop 32.0
        %v553 = vmul.f32 %v551, %v552
        %v554 = vsub.f32 %v545, %v553
        %v555 = vmul.f32 %v554, %v554
        %v556 = vsel %vm548, %v555, 0.0
        %557 = vadd.xlane.f32.xlu0 %v556
        %v558 = vpop.xlane.xlu0 %557
        %v559 = vmul.f32 %v558, %v552
        %v560 = vadd.f32 %v559, 1e-05
        %v561 = vrsqrt.pop %v560
        %v562 = vmul.f32 %v554, %v561
        %v564 = vlaneseq
        %v565 = vshrl.u32 %v564, 7
        %v566 = vsub.s32 0, %v565
        %v567 = vrot.slane %v546, %v566
        %v569 = vmul.f32 %v562, %v567
        %v571 = vlaneseq
        %v572 = vshrl.u32 %v571, 7
        %v573 = vsub.s32 0, %v572
        %v574 = vrot.slane %v547, %v573
        %v576 = vadd.f32 %v569, %v574
        %v577 = vpack.c.bf16 %v576, %v576
        %v578 = vlaneseq
        %v579 = vshrl.u32 %v578, 7
        %v580 = vlaneseq
        %v581 = vand.u32 %v580, 127
        %vm582 = vcmp.le.s32.totalorder %v581, %v579
        %v583 = vld [vmem:[%s3] sm:$0xf]
        %v584 = vld [vmem:[%s3 + $0x4] sm:$0xf]
        %v585 = vld [vmem:[%s3 + $0x8] sm:$0xf]
        %v586 = vld [vmem:[%s3 + $0xc] sm:$0xf]
        %v587 = vld [vmem:[%s4] sm:$0x1]
        %v589 = vlaneseq
        %v590 = vshrl.u32 %v589, 7
        %v591 = vsub.s32 0, %v590
        %v592 = vrot.slane %v587, %v591
        %v598 = vunpack.c.l.b16 %v583
        %v599 = vunpack.c.l.b16 %v584
        %v600 = vunpack.c.l.b16 %v585
        %v601 = vunpack.c.l.b16 %v586
        %v602 = vpack.c.b16 %v599, %v598
        %v603 = vpack.c.b16 %v601, %v600
        %v607 = vsel %vm548, %v577, 0
        %609 = vmatprep.subr.bf16.mxu0 0
        %610 = vmatpush1.bf16.msra.mxu0 0
        %611 = vmatprep.subr.bf16.mxu0 0
        %612 = vmatpush1.bf16.msra.mxu0 0
        %613 = vmatprep.subr.bf16.mxu0 0
        %614 = vmatpush1.bf16.msra.mxu0 0
        %615 = vmatprep.subr.bf16.mxu0 0
        %616 = vmatpush1.bf16.msra.mxu0 0
        %617 = vmatprep.subr.bf16.mxu0 0
        %618 = vmatpush1.bf16.msra.mxu0 0
        %619 = vmatprep.subr.bf16.mxu0 0
        %620 = vmatpush1.bf16.msra.mxu0 0
        %621 = vmatprep.subr.bf16.mxu0 0
        %622 = vmatpush1.bf16.msra.mxu0 %v603
        %623 = vmatprep.subr.bf16.mxu0 0
        %624 = vmatpush1.bf16.msra.mxu0 %v602
        %625 = vmatprep.subr.bf16.mxu0 0
        %626 = vmatpush2.bf16.msra.mxu0 0
        %627 = vmatprep.subr.bf16.mxu0 0
        %628 = vmatpush2.bf16.msra.mxu0 0
        %629 = vmatprep.subr.bf16.mxu0 0
        %630 = vmatpush2.bf16.msra.mxu0 0
        %631 = vmatprep.subr.bf16.mxu0 0
        %632 = vmatpush2.bf16.msra.mxu0 0
        %633 = vmatprep.subr.bf16.mxu0 0
        %634 = vmatpush2.bf16.msra.mxu0 0
        %635 = vmatprep.subr.bf16.mxu0 0
        %636 = vmatpush2.bf16.msra.mxu0 0
        %637 = vmatprep.subr.bf16.mxu0 0
        %638 = vmatpush2.bf16.msra.mxu0 0
        %639 = vmatprep.subr.bf16.mxu0 0
        %640 = vmatpush2.bf16.msra.mxu0 0
        %641 = vmatprep.mubr.bf16.mxu0 0
        %642 = vmatmul.mubr.bf16.gmra.mxu0 %v607
        %v643 = vpop.f32.mrf.mxu0
        %v644 = vadd.f32 %v592, %v643
        %v645 = vpop.f32.mrf.mxu0
        %v646 = vpop.f32.mrf.mxu0
        %v647 = vpop.f32.mrf.mxu0
        %648 = vdwg.mxu0
        %v649 = vld [vmem:[%s5] sm:$0xf]
        %v650 = vld [vmem:[%s5 + $0x4] sm:$0xf]
        %v651 = vld [vmem:[%s5 + $0x8] sm:$0xf]
        %v652 = vld [vmem:[%s5 + $0xc] sm:$0xf]
        %v653 = vld [vmem:[%s6] sm:$0x1]
        %v655 = vlaneseq
        %v656 = vshrl.u32 %v655, 7
        %v657 = vsub.s32 0, %v656
        %v658 = vrot.slane %v653, %v657
        %v664 = vunpack.c.l.b16 %v649
        %v665 = vunpack.c.l.b16 %v650
        %v666 = vunpack.c.l.b16 %v651
        %v667 = vunpack.c.l.b16 %v652
        %v668 = vpack.c.b16 %v665, %v664
        %v669 = vpack.c.b16 %v667, %v666
        %672 = vmatprep.subr.bf16.mxu0 0
        %673 = vmatpush1.bf16.msra.mxu0 0
        %674 = vmatprep.subr.bf16.mxu0 0
        %675 = vmatpush1.bf16.msra.mxu0 0
        %676 = vmatprep.subr.bf16.mxu0 0
        %677 = vmatpush1.bf16.msra.mxu0 0
        %678 = vmatprep.subr.bf16.mxu0 0
        %679 = vmatpush1.bf16.msra.mxu0 0
        %680 = vmatprep.subr.bf16.mxu0 0
        %681 = vmatpush1.bf16.msra.mxu0 0
        %682 = vmatprep.subr.bf16.mxu0 0
        %683 = vmatpush1.bf16.msra.mxu0 0
        %684 = vmatprep.subr.bf16.mxu0 0
        %685 = vmatpush1.bf16.msra.mxu0 %v669
        %686 = vmatprep.subr.bf16.mxu0 0
        %687 = vmatpush1.bf16.msra.mxu0 %v668
        %688 = vmatprep.subr.bf16.mxu0 0
        %689 = vmatpush2.bf16.msra.mxu0 0
        %690 = vmatprep.subr.bf16.mxu0 0
        %691 = vmatpush2.bf16.msra.mxu0 0
        %692 = vmatprep.subr.bf16.mxu0 0
        %693 = vmatpush2.bf16.msra.mxu0 0
        %694 = vmatprep.subr.bf16.mxu0 0
        %695 = vmatpush2.bf16.msra.mxu0 0
        %696 = vmatprep.subr.bf16.mxu0 0
        %697 = vmatpush2.bf16.msra.mxu0 0
        %698 = vmatprep.subr.bf16.mxu0 0
        %699 = vmatpush2.bf16.msra.mxu0 0
        %700 = vmatprep.subr.bf16.mxu0 0
        %701 = vmatpush2.bf16.msra.mxu0 0
        %702 = vmatprep.subr.bf16.mxu0 0
        %703 = vmatpush2.bf16.msra.mxu0 0
        %704 = vmatprep.mubr.bf16.mxu0 0
        %705 = vmatmul.mubr.bf16.gmra.mxu0 %v607
        %v706 = vpop.f32.mrf.mxu0
        %v707 = vadd.f32 %v658, %v706
        %v708 = vpop.f32.mrf.mxu0
        %v709 = vpop.f32.mrf.mxu0
        %v710 = vpop.f32.mrf.mxu0
        %711 = vdwg.mxu0
        %v712 = vld [vmem:[%s7] sm:$0xf]
        %v713 = vld [vmem:[%s7 + $0x4] sm:$0xf]
        %v714 = vld [vmem:[%s7 + $0x8] sm:$0xf]
        %v715 = vld [vmem:[%s7 + $0xc] sm:$0xf]
        %v716 = vld [vmem:[%s8] sm:$0x1]
        %v718 = vlaneseq
        %v719 = vshrl.u32 %v718, 7
        %v720 = vsub.s32 0, %v719
        %v721 = vrot.slane %v716, %v720
        %v727 = vunpack.c.l.b16 %v712
        %v728 = vunpack.c.l.b16 %v713
        %v729 = vunpack.c.l.b16 %v714
        %v730 = vunpack.c.l.b16 %v715
        %v731 = vpack.c.b16 %v728, %v727
        %v732 = vpack.c.b16 %v730, %v729
        %735 = vmatprep.subr.bf16.mxu0 0
        %736 = vmatpush1.bf16.msra.mxu0 0
        %737 = vmatprep.subr.bf16.mxu0 0
        %738 = vmatpush1.bf16.msra.mxu0 0
        %739 = vmatprep.subr.bf16.mxu0 0
        %740 = vmatpush1.bf16.msra.mxu0 0
        %741 = vmatprep.subr.bf16.mxu0 0
        %742 = vmatpush1.bf16.msra.mxu0 0
        %743 = vmatprep.subr.bf16.mxu0 0
        %744 = vmatpush1.bf16.msra.mxu0 0
        %745 = vmatprep.subr.bf16.mxu0 0
        %746 = vmatpush1.bf16.msra.mxu0 0
        %747 = vmatprep.subr.bf16.mxu0 0
        %748 = vmatpush1.bf16.msra.mxu0 %v732
        %749 = vmatprep.subr.bf16.mxu0 0
        %750 = vmatpush1.bf16.msra.mxu0 %v731
        %751 = vmatprep.subr.bf16.mxu0 0
        %752 = vmatpush2.bf16.msra.mxu0 0
        %753 = vmatprep.subr.bf16.mxu0 0
        %754 = vmatpush2.bf16.msra.mxu0 0
        %755 = vmatprep.subr.bf16.mxu0 0
        %756 = vmatpush2.bf16.msra.mxu0 0
        %757 = vmatprep.subr.bf16.mxu0 0
        %758 = vmatpush2.bf16.msra.mxu0 0
        %759 = vmatprep.subr.bf16.mxu0 0
        %760 = vmatpush2.bf16.msra.mxu0 0
        %761 = vmatprep.subr.bf16.mxu0 0
        %762 = vmatpush2.bf16.msra.mxu0 0
        %763 = vmatprep.subr.bf16.mxu0 0
        %764 = vmatpush2.bf16.msra.mxu0 0
        %765 = vmatprep.subr.bf16.mxu0 0
        %766 = vmatpush2.bf16.msra.mxu0 0
        %767 = vmatprep.mubr.bf16.mxu0 0
        %768 = vmatmul.mubr.bf16.gmra.mxu0 %v607
        %v769 = vpop.f32.mrf.mxu0
        %v770 = vadd.f32 %v721, %v769
        %v771 = vpop.f32.mrf.mxu0
        %v772 = vpop.f32.mrf.mxu0
        %v773 = vpop.f32.mrf.mxu0
        %774 = vdwg.mxu0
        %v775 = vpack.c.bf16 %v644, %v644
        %v776 = vpack.c.bf16 %v707, %v707
        %vm777 = vcmask 64512
        %v779 = vsel %vm777, %v775, 0
        %v782 = vsel %vm777, %v776, 0
        %784 = vmatprep.subr.bf16.mxu0 0
        %785 = vmatpush1.bf16.xpose.msra.mxu0 0
        %786 = vmatprep.subr.bf16.mxu0 0
        %787 = vmatpush1.bf16.xpose.msra.mxu0 0
        %788 = vmatprep.subr.bf16.mxu0 0
        %789 = vmatpush1.bf16.xpose.msra.mxu0 0
        %790 = vmatprep.subr.bf16.mxu0 0
        %791 = vmatpush1.bf16.xpose.msra.mxu0 0
        %792 = vmatprep.subr.bf16.mxu0 0
        %793 = vmatpush1.bf16.xpose.msra.mxu0 0
        %794 = vmatprep.subr.bf16.mxu0 0
        %795 = vmatpush1.bf16.xpose.msra.mxu0 0
        %796 = vmatprep.subr.bf16.mxu0 0
        %797 = vmatpush1.bf16.xpose.msra.mxu0 0
        %798 = vmatprep.subr.bf16.mxu0 0
        %799 = vmatpush1.bf16.xpose.msra.mxu0 %v782
        %800 = vmatprep.subr.bf16.mxu0 0
        %801 = vmatpush2.bf16.xpose.msra.mxu0 0
        %802 = vmatprep.subr.bf16.mxu0 0
        %803 = vmatpush2.bf16.xpose.msra.mxu0 0
        %804 = vmatprep.subr.bf16.mxu0 0
        %805 = vmatpush2.bf16.xpose.msra.mxu0 0
        %806 = vmatprep.subr.bf16.mxu0 0
        %807 = vmatpush2.bf16.xpose.msra.mxu0 0
        %808 = vmatprep.subr.bf16.mxu0 0
        %809 = vmatpush2.bf16.xpose.msra.mxu0 0
        %810 = vmatprep.subr.bf16.mxu0 0
        %811 = vmatpush2.bf16.xpose.msra.mxu0 0
        %812 = vmatprep.subr.bf16.mxu0 0
        %813 = vmatpush2.bf16.xpose.msra.mxu0 0
        %814 = vmatprep.subr.bf16.mxu0 0
        %815 = vmatpush2.bf16.xpose.msra.mxu0 0
        %816 = vmatprep.mubr.bf16.mxu0 0
        %817 = vmatmul.mubr.bf16.gmra.mxu0 %v779
        %v818 = vpop.f32.mrf.mxu0
        %v819 = vadd.f32 0.0, %v818
        %v820 = vpop.f32.mrf.mxu0
        %v821 = vpop.f32.mrf.mxu0
        %v822 = vpop.f32.mrf.mxu0
        %823 = vdwg.mxu0
        %v824 = vsel %vm582, %v819, -1e+30
        %v825 = vsel %vm777, %v824, -inf
        %826 = vmax.xlane.f32.xlu0 %v825
        %v827 = vpop.xlane.xlu0 %826
        %v828 = vsub.f32 %v824, %v827
        %v829 = vmul.f32 %v828, 1.442695
        %v830 = vpow.pop %v829
        %v831 = vsel %vm777, %v830, 0.0
        %832 = vadd.xlane.f32.xlu0 %v831
        %v833 = vpop.xlane.xlu0 %832
        %v834 = vrcp.pop %v833
        %v835 = vmul.f32 %v830, %v834
        %v836 = vpack.c.bf16 %v835, %v835
        %v837 = vpack.c.bf16 %v770, %v770
        %v839 = vsel %vm777, %v836, 0
        %vm841 = vcmask 1043456
        %v843 = vsel %vm841, %v837, 0
        %845 = vmatprep.subr.bf16.mxu0 0
        %846 = vmatpush1.bf16.msra.mxu0 0
        %847 = vmatprep.subr.bf16.mxu0 0
        %848 = vmatpush1.bf16.msra.mxu0 0
        %849 = vmatprep.subr.bf16.mxu0 0
        %850 = vmatpush1.bf16.msra.mxu0 0
        %851 = vmatprep.subr.bf16.mxu0 0
        %852 = vmatpush1.bf16.msra.mxu0 0
        %853 = vmatprep.subr.bf16.mxu0 0
        %854 = vmatpush1.bf16.msra.mxu0 0
        %855 = vmatprep.subr.bf16.mxu0 0
        %856 = vmatpush1.bf16.msra.mxu0 0
        %857 = vmatprep.subr.bf16.mxu0 0
        %858 = vmatpush1.bf16.msra.mxu0 0
        %859 = vmatprep.subr.bf16.mxu0 0
        %860 = vmatpush1.bf16.msra.mxu0 %v843
        %861 = vmatprep.subr.bf16.mxu0 0
        %862 = vmatpush2.bf16.msra.mxu0 0
        %863 = vmatprep.subr.bf16.mxu0 0
        %864 = vmatpush2.bf16.msra.mxu0 0
        %865 = vmatprep.subr.bf16.mxu0 0
        %866 = vmatpush2.bf16.msra.mxu0 0
        %867 = vmatprep.subr.bf16.mxu0 0
        %868 = vmatpush2.bf16.msra.mxu0 0
        %869 = vmatprep.subr.bf16.mxu0 0
        %870 = vmatpush2.bf16.msra.mxu0 0
        %871 = vmatprep.subr.bf16.mxu0 0
        %872 = vmatpush2.bf16.msra.mxu0 0
        %873 = vmatprep.subr.bf16.mxu0 0
        %874 = vmatpush2.bf16.msra.mxu0 0
        %875 = vmatprep.subr.bf16.mxu0 0
        %876 = vmatpush2.bf16.msra.mxu0 0
        %877 = vmatprep.mubr.bf16.mxu0 0
        %878 = vmatmul.mubr.bf16.gmra.mxu0 %v839
        %v879 = vpop.f32.mrf.mxu0
        %v880 = vadd.f32 0.0, %v879
        %v881 = vpop.f32.mrf.mxu0
        %v882 = vpop.f32.mrf.mxu0
        %v883 = vpop.f32.mrf.mxu0
        %884 = vdwg.mxu0
        %v885 = vpack.c.bf16 %v880, %v880
        %v886 = vld [vmem:[%s9] sm:$0xf]
        %s887 = scalar_lea.vmem %s3, 16
        %v888 = vld [vmem:[%s887] sm:$0xf]
        %v889 = vld [vmem:[%s887 + $0x4] sm:$0xf]
        %v890 = vld [vmem:[%s887 + $0x8] sm:$0xf]
        %v891 = vld [vmem:[%s887 + $0xc] sm:$0xf]
        %s892 = scalar_lea.vmem %s4, 1
        %v893 = vld [vmem:[%s892] sm:$0x1]
        %v895 = vlaneseq
        %v896 = vshrl.u32 %v895, 7
        %v897 = vsub.s32 0, %v896
        %v898 = vrot.slane %v893, %v897
        %v904 = vunpack.c.l.b16 %v888
        %v905 = vunpack.c.l.b16 %v889
        %v906 = vunpack.c.l.b16 %v890
        %v907 = vunpack.c.l.b16 %v891
        %v908 = vpack.c.b16 %v905, %v904
        %v909 = vpack.c.b16 %v907, %v906
        %912 = vmatprep.subr.bf16.mxu0 0
        %913 = vmatpush1.bf16.msra.mxu0 0
        %914 = vmatprep.subr.bf16.mxu0 0
        %915 = vmatpush1.bf16.msra.mxu0 0
        %916 = vmatprep.subr.bf16.mxu0 0
        %917 = vmatpush1.bf16.msra.mxu0 0
        %918 = vmatprep.subr.bf16.mxu0 0
        %919 = vmatpush1.bf16.msra.mxu0 0
        %920 = vmatprep.subr.bf16.mxu0 0
        %921 = vmatpush1.bf16.msra.mxu0 0
        %922 = vmatprep.subr.bf16.mxu0 0
        %923 = vmatpush1.bf16.msra.mxu0 0
        %924 = vmatprep.subr.bf16.mxu0 0
        %925 = vmatpush1.bf16.msra.mxu0 %v909
        %926 = vmatprep.subr.bf16.mxu0 0
        %927 = vmatpush1.bf16.msra.mxu0 %v908
        %928 = vmatprep.subr.bf16.mxu0 0
        %929 = vmatpush2.bf16.msra.mxu0 0
        %930 = vmatprep.subr.bf16.mxu0 0
        %931 = vmatpush2.bf16.msra.mxu0 0
        %932 = vmatprep.subr.bf16.mxu0 0
        %933 = vmatpush2.bf16.msra.mxu0 0
        %934 = vmatprep.subr.bf16.mxu0 0
        %935 = vmatpush2.bf16.msra.mxu0 0
        %936 = vmatprep.subr.bf16.mxu0 0
        %937 = vmatpush2.bf16.msra.mxu0 0
        %938 = vmatprep.subr.bf16.mxu0 0
        %939 = vmatpush2.bf16.msra.mxu0 0
        %940 = vmatprep.subr.bf16.mxu0 0
        %941 = vmatpush2.bf16.msra.mxu0 0
        %942 = vmatprep.subr.bf16.mxu0 0
        %943 = vmatpush2.bf16.msra.mxu0 0
        %944 = vmatprep.mubr.bf16.mxu0 0
        %945 = vmatmul.mubr.bf16.gmra.mxu0 %v607
        %v946 = vpop.f32.mrf.mxu0
        %v947 = vadd.f32 %v898, %v946
        %v948 = vpop.f32.mrf.mxu0
        %v949 = vpop.f32.mrf.mxu0
        %v950 = vpop.f32.mrf.mxu0
        %951 = vdwg.mxu0
        %s952 = scalar_lea.vmem %s5, 16
        %v953 = vld [vmem:[%s952] sm:$0xf]
        %v954 = vld [vmem:[%s952 + $0x4] sm:$0xf]
        %v955 = vld [vmem:[%s952 + $0x8] sm:$0xf]
        %v956 = vld [vmem:[%s952 + $0xc] sm:$0xf]
        %s957 = scalar_lea.vmem %s6, 1
        %v958 = vld [vmem:[%s957] sm:$0x1]
        %v960 = vlaneseq
        %v961 = vshrl.u32 %v960, 7
        %v962 = vsub.s32 0, %v961
        %v963 = vrot.slane %v958, %v962
        %v969 = vunpack.c.l.b16 %v953
        %v970 = vunpack.c.l.b16 %v954
        %v971 = vunpack.c.l.b16 %v955
        %v972 = vunpack.c.l.b16 %v956
        %v973 = vpack.c.b16 %v970, %v969
        %v974 = vpack.c.b16 %v972, %v971
        %977 = vmatprep.subr.bf16.mxu0 0
        %978 = vmatpush1.bf16.msra.mxu0 0
        %979 = vmatprep.subr.bf16.mxu0 0
        %980 = vmatpush1.bf16.msra.mxu0 0
        %981 = vmatprep.subr.bf16.mxu0 0
        %982 = vmatpush1.bf16.msra.mxu0 0
        %983 = vmatprep.subr.bf16.mxu0 0
        %984 = vmatpush1.bf16.msra.mxu0 0
        %985 = vmatprep.subr.bf16.mxu0 0
        %986 = vmatpush1.bf16.msra.mxu0 0
        %987 = vmatprep.subr.bf16.mxu0 0
        %988 = vmatpush1.bf16.msra.mxu0 0
        %989 = vmatprep.subr.bf16.mxu0 0
        %990 = vmatpush1.bf16.msra.mxu0 %v974
        %991 = vmatprep.subr.bf16.mxu0 0
        %992 = vmatpush1.bf16.msra.mxu0 %v973
        %993 = vmatprep.subr.bf16.mxu0 0
        %994 = vmatpush2.bf16.msra.mxu0 0
        %995 = vmatprep.subr.bf16.mxu0 0
        %996 = vmatpush2.bf16.msra.mxu0 0
        %997 = vmatprep.subr.bf16.mxu0 0
        %998 = vmatpush2.bf16.msra.mxu0 0
        %999 = vmatprep.subr.bf16.mxu0 0
        %1000 = vmatpush2.bf16.msra.mxu0 0
        %1001 = vmatprep.subr.bf16.mxu0 0
        %1002 = vmatpush2.bf16.msra.mxu0 0
        %1003 = vmatprep.subr.bf16.mxu0 0
        %1004 = vmatpush2.bf16.msra.mxu0 0
        %1005 = vmatprep.subr.bf16.mxu0 0
        %1006 = vmatpush2.bf16.msra.mxu0 0
        %1007 = vmatprep.subr.bf16.mxu0 0
        %1008 = vmatpush2.bf16.msra.mxu0 0
        %1009 = vmatprep.mubr.bf16.mxu0 0
        %1010 = vmatmul.mubr.bf16.gmra.mxu0 %v607
        %v1011 = vpop.f32.mrf.mxu0
        %v1012 = vadd.f32 %v963, %v1011
        %v1013 = vpop.f32.mrf.mxu0
        %v1014 = vpop.f32.mrf.mxu0
        %v1015 = vpop.f32.mrf.mxu0
        %1016 = vdwg.mxu0
        %s1017 = scalar_lea.vmem %s7, 16
        %v1018 = vld [vmem:[%s1017] sm:$0xf]
        %v1019 = vld [vmem:[%s1017 + $0x4] sm:$0xf]
        %v1020 = vld [vmem:[%s1017 + $0x8] sm:$0xf]
        %v1021 = vld [vmem:[%s1017 + $0xc] sm:$0xf]
        %s1022 = scalar_lea.vmem %s8, 1
        %v1023 = vld [vmem:[%s1022] sm:$0x1]
        %v1025 = vlaneseq
        %v1026 = vshrl.u32 %v1025, 7
        %v1027 = vsub.s32 0, %v1026
        %v1028 = vrot.slane %v1023, %v1027
        %v1034 = vunpack.c.l.b16 %v1018
        %v1035 = vunpack.c.l.b16 %v1019
        %v1036 = vunpack.c.l.b16 %v1020
        %v1037 = vunpack.c.l.b16 %v1021
        %v1038 = vpack.c.b16 %v1035, %v1034
        %v1039 = vpack.c.b16 %v1037, %v1036
        %1042 = vmatprep.subr.bf16.mxu0 0
        %1043 = vmatpush1.bf16.msra.mxu0 0
        %1044 = vmatprep.subr.bf16.mxu0 0
        %1045 = vmatpush1.bf16.msra.mxu0 0
        %1046 = vmatprep.subr.bf16.mxu0 0
        %1047 = vmatpush1.bf16.msra.mxu0 0
        %1048 = vmatprep.subr.bf16.mxu0 0
        %1049 = vmatpush1.bf16.msra.mxu0 0
        %1050 = vmatprep.subr.bf16.mxu0 0
        %1051 = vmatpush1.bf16.msra.mxu0 0
        %1052 = vmatprep.subr.bf16.mxu0 0
        %1053 = vmatpush1.bf16.msra.mxu0 0
        %1054 = vmatprep.subr.bf16.mxu0 0
        %1055 = vmatpush1.bf16.msra.mxu0 %v1039
        %1056 = vmatprep.subr.bf16.mxu0 0
        %1057 = vmatpush1.bf16.msra.mxu0 %v1038
        %1058 = vmatprep.subr.bf16.mxu0 0
        %1059 = vmatpush2.bf16.msra.mxu0 0
        %1060 = vmatprep.subr.bf16.mxu0 0
        %1061 = vmatpush2.bf16.msra.mxu0 0
        %1062 = vmatprep.subr.bf16.mxu0 0
        %1063 = vmatpush2.bf16.msra.mxu0 0
        %1064 = vmatprep.subr.bf16.mxu0 0
        %1065 = vmatpush2.bf16.msra.mxu0 0
        %1066 = vmatprep.subr.bf16.mxu0 0
        %1067 = vmatpush2.bf16.msra.mxu0 0
        %1068 = vmatprep.subr.bf16.mxu0 0
        %1069 = vmatpush2.bf16.msra.mxu0 0
        %1070 = vmatprep.subr.bf16.mxu0 0
        %1071 = vmatpush2.bf16.msra.mxu0 0
        %1072 = vmatprep.subr.bf16.mxu0 0
        %1073 = vmatpush2.bf16.msra.mxu0 0
        %1074 = vmatprep.mubr.bf16.mxu0 0
        %1075 = vmatmul.mubr.bf16.gmra.mxu0 %v607
        %v1076 = vpop.f32.mrf.mxu0
        %v1077 = vadd.f32 %v1028, %v1076
        %v1078 = vpop.f32.mrf.mxu0
        %v1079 = vpop.f32.mrf.mxu0
        %v1080 = vpop.f32.mrf.mxu0
        %1081 = vdwg.mxu0
        %v1082 = vpack.c.bf16 %v947, %v947
        %v1083 = vpack.c.bf16 %v1012, %v1012
        %v1085 = vsel %vm777, %v1082, 0
        %v1088 = vsel %vm777, %v1083, 0
        %1090 = vmatprep.subr.bf16.mxu0 0
        %1091 = vmatpush1.bf16.xpose.msra.mxu0 0
        %1092 = vmatprep.subr.bf16.mxu0 0
        %1093 = vmatpush1.bf16.xpose.msra.mxu0 0
        %1094 = vmatprep.subr.bf16.mxu0 0
        %1095 = vmatpush1.bf16.xpose.msra.mxu0 0
        %1096 = vmatprep.subr.bf16.mxu0 0
        %1097 = vmatpush1.bf16.xpose.msra.mxu0 0
        %1098 = vmatprep.subr.bf16.mxu0 0
        %1099 = vmatpush1.bf16.xpose.msra.mxu0 0
        %1100 = vmatprep.subr.bf16.mxu0 0
        %1101 = vmatpush1.bf16.xpose.msra.mxu0 0
        %1102 = vmatprep.subr.bf16.mxu0 0
        %1103 = vmatpush1.bf16.xpose.msra.mxu0 0
        %1104 = vmatprep.subr.bf16.mxu0 0
        %1105 = vmatpush1.bf16.xpose.msra.mxu0 %v1088
        %1106 = vmatprep.subr.bf16.mxu0 0
        %1107 = vmatpush2.bf16.xpose.msra.mxu0 0
        %1108 = vmatprep.subr.bf16.mxu0 0
        %1109 = vmatpush2.bf16.xpose.msra.mxu0 0
        %1110 = vmatprep.subr.bf16.mxu0 0
        %1111 = vmatpush2.bf16.xpose.msra.mxu0 0
        %1112 = vmatprep.subr.bf16.mxu0 0
        %1113 = vmatpush2.bf16.xpose.msra.mxu0 0
        %1114 = vmatprep.subr.bf16.mxu0 0
        %1115 = vmatpush2.bf16.xpose.msra.mxu0 0
        %1116 = vmatprep.subr.bf16.mxu0 0
        %1117 = vmatpush2.bf16.xpose.msra.mxu0 0
        %1118 = vmatprep.subr.bf16.mxu0 0
        %1119 = vmatpush2.bf16.xpose.msra.mxu0 0
        %1120 = vmatprep.subr.bf16.mxu0 0
        %1121 = vmatpush2.bf16.xpose.msra.mxu0 0
        %1122 = vmatprep.mubr.bf16.mxu0 0
        %1123 = vmatmul.mubr.bf16.gmra.mxu0 %v1085
        %v1124 = vpop.f32.mrf.mxu0
        %v1125 = vadd.f32 0.0, %v1124
        %v1126 = vpop.f32.mrf.mxu0
        %v1127 = vpop.f32.mrf.mxu0
        %v1128 = vpop.f32.mrf.mxu0
        %1129 = vdwg.mxu0
        %v1130 = vsel %vm582, %v1125, -1e+30
        %v1131 = vsel %vm777, %v1130, -inf
        %1132 = vmax.xlane.f32.xlu0 %v1131
        %v1133 = vpop.xlane.xlu0 %1132
        %v1134 = vsub.f32 %v1130, %v1133
        %v1135 = vmul.f32 %v1134, 1.442695
        %v1136 = vpow.pop %v1135
        %v1137 = vsel %vm777, %v1136, 0.0
        %1138 = vadd.xlane.f32.xlu0 %v1137
        %v1139 = vpop.xlane.xlu0 %1138
        %v1140 = vrcp.pop %v1139
        %v1141 = vmul.f32 %v1136, %v1140
        %v1142 = vpack.c.bf16 %v1141, %v1141
        %v1143 = vpack.c.bf16 %v1077, %v1077
        %v1145 = vsel %vm777, %v1142, 0
        %v1148 = vsel %vm841, %v1143, 0
        %1150 = vmatprep.subr.bf16.mxu0 0
        %1151 = vmatpush1.bf16.msra.mxu0 0
        %1152 = vmatprep.subr.bf16.mxu0 0
        %1153 = vmatpush1.bf16.msra.mxu0 0
        %1154 = vmatprep.subr.bf16.mxu0 0
        %1155 = vmatpush1.bf16.msra.mxu0 0
        %1156 = vmatprep.subr.bf16.mxu0 0
        %1157 = vmatpush1.bf16.msra.mxu0 0
        %1158 = vmatprep.subr.bf16.mxu0 0
        %1159 = vmatpush1.bf16.msra.mxu0 0
        %1160 = vmatprep.subr.bf16.mxu0 0
        %1161 = vmatpush1.bf16.msra.mxu0 0
        %1162 = vmatprep.subr.bf16.mxu0 0
        %1163 = vmatpush1.bf16.msra.mxu0 0
        %1164 = vmatprep.subr.bf16.mxu0 0
        %1165 = vmatpush1.bf16.msra.mxu0 %v1148
        %1166 = vmatprep.subr.bf16.mxu0 0
        %1167 = vmatpush2.bf16.msra.mxu0 0
        %1168 = vmatprep.subr.bf16.mxu0 0
        %1169 = vmatpush2.bf16.msra.mxu0 0
        %1170 = vmatprep.subr.bf16.mxu0 0
        %1171 = vmatpush2.bf16.msra.mxu0 0
        %1172 = vmatprep.subr.bf16.mxu0 0
        %1173 = vmatpush2.bf16.msra.mxu0 0
        %1174 = vmatprep.subr.bf16.mxu0 0
        %1175 = vmatpush2.bf16.msra.mxu0 0
        %1176 = vmatprep.subr.bf16.mxu0 0
        %1177 = vmatpush2.bf16.msra.mxu0 0
        %1178 = vmatprep.subr.bf16.mxu0 0
        %1179 = vmatpush2.bf16.msra.mxu0 0
        %1180 = vmatprep.subr.bf16.mxu0 0
        %1181 = vmatpush2.bf16.msra.mxu0 0
        %1182 = vmatprep.mubr.bf16.mxu0 0
        %1183 = vmatmul.mubr.bf16.gmra.mxu0 %v1145
        %v1184 = vpop.f32.mrf.mxu0
        %v1185 = vadd.f32 0.0, %v1184
        %v1186 = vpop.f32.mrf.mxu0
        %v1187 = vpop.f32.mrf.mxu0
        %v1188 = vpop.f32.mrf.mxu0
        %1189 = vdwg.mxu0
        %v1190 = vpack.c.bf16 %v1185, %v1185
        %s1191 = scalar_lea.vmem %s9, 4
        %v1192 = vld [vmem:[%s1191] sm:$0xf]
        %v1194 = vsel %vm777, %v1190, 0
        %v1197 = vsel %vm841, %v1192, 0
        %1199 = vmatprep.subr.bf16.mxu0 0
        %1200 = vmatpush1.bf16.msra.mxu0 0
        %1201 = vmatprep.subr.bf16.mxu0 0
        %1202 = vmatpush1.bf16.msra.mxu0 0
        %1203 = vmatprep.subr.bf16.mxu0 0
        %1204 = vmatpush1.bf16.msra.mxu0 0
        %1205 = vmatprep.subr.bf16.mxu0 0
        %1206 = vmatpush1.bf16.msra.mxu0 0
        %1207 = vmatprep.subr.bf16.mxu0 0
        %1208 = vmatpush1.bf16.msra.mxu0 0
        %1209 = vmatprep.subr.bf16.mxu0 0
        %1210 = vmatpush1.bf16.msra.mxu0 0
        %1211 = vmatprep.subr.bf16.mxu0 0
        %1212 = vmatpush1.bf16.msra.mxu0 0
        %1213 = vmatprep.subr.bf16.mxu0 0
        %1214 = vmatpush1.bf16.msra.mxu0 %v1197
        %1215 = vmatprep.subr.bf16.mxu0 0
        %1216 = vmatpush2.bf16.msra.mxu0 0
        %1217 = vmatprep.subr.bf16.mxu0 0
        %1218 = vmatpush2.bf16.msra.mxu0 0
        %1219 = vmatprep.subr.bf16.mxu0 0
        %1220 = vmatpush2.bf16.msra.mxu0 0
        %1221 = vmatprep.subr.bf16.mxu0 0
        %1222 = vmatpush2.bf16.msra.mxu0 0
        %1223 = vmatprep.subr.bf16.mxu0 0
        %1224 = vmatpush2.bf16.msra.mxu0 0
        %1225 = vmatprep.subr.bf16.mxu0 0
        %1226 = vmatpush2.bf16.msra.mxu0 0
        %1227 = vmatprep.subr.bf16.mxu0 0
        %1228 = vmatpush2.bf16.msra.mxu0 0
        %1229 = vmatprep.subr.bf16.mxu0 0
        %1230 = vmatpush2.bf16.msra.mxu0 0
        %1231 = vmatprep.mubr.bf16.mxu0 0
        %1232 = vmatmul.mubr.bf16.gmra.mxu0 %v1194
        %v1233 = vpop.f32.mrf.mxu0
        %v1234 = vadd.f32 0.0, %v1233
        %v1235 = vpop.f32.mrf.mxu0
        %v1236 = vpop.f32.mrf.mxu0
        %v1237 = vpop.f32.mrf.mxu0
        %1238 = vdwg.mxu0
        %v1240 = vsel %vm777, %v885, 0
        %v1243 = vsel %vm841, %v886, 0
        %1245 = vmatprep.subr.bf16.mxu0 0
        %1246 = vmatpush1.bf16.msra.mxu0 0
        %1247 = vmatprep.subr.bf16.mxu0 0
        %1248 = vmatpush1.bf16.msra.mxu0 0
        %1249 = vmatprep.subr.bf16.mxu0 0
        %1250 = vmatpush1.bf16.msra.mxu0 0
        %1251 = vmatprep.subr.bf16.mxu0 0
        %1252 = vmatpush1.bf16.msra.mxu0 0
        %1253 = vmatprep.subr.bf16.mxu0 0
        %1254 = vmatpush1.bf16.msra.mxu0 0
        %1255 = vmatprep.subr.bf16.mxu0 0
        %1256 = vmatpush1.bf16.msra.mxu0 0
        %1257 = vmatprep.subr.bf16.mxu0 0
        %1258 = vmatpush1.bf16.msra.mxu0 0
        %1259 = vmatprep.subr.bf16.mxu0 0
        %1260 = vmatpush1.bf16.msra.mxu0 %v1243
        %1261 = vmatprep.subr.bf16.mxu0 0
        %1262 = vmatpush2.bf16.msra.mxu0 0
        %1263 = vmatprep.subr.bf16.mxu0 0
        %1264 = vmatpush2.bf16.msra.mxu0 0
        %1265 = vmatprep.subr.bf16.mxu0 0
        %1266 = vmatpush2.bf16.msra.mxu0 0
        %1267 = vmatprep.subr.bf16.mxu0 0
        %1268 = vmatpush2.bf16.msra.mxu0 0
        %1269 = vmatprep.subr.bf16.mxu0 0
        %1270 = vmatpush2.bf16.msra.mxu0 0
        %1271 = vmatprep.subr.bf16.mxu0 0
        %1272 = vmatpush2.bf16.msra.mxu0 0
        %1273 = vmatprep.subr.bf16.mxu0 0
        %1274 = vmatpush2.bf16.msra.mxu0 0
        %1275 = vmatprep.subr.bf16.mxu0 0
        %1276 = vmatpush2.bf16.msra.mxu0 0
        %1277 = vmatprep.mubr.bf16.mxu0 0
        %1278 = vmatmul.mubr.bf16.gmra.mxu0 %v1240
        %v1279 = vpop.f32.mrf.mxu0
        %v1280 = vadd.f32 %v1234, %v1279
        %v1281 = vpop.f32.mrf.mxu0
        %v1282 = vpop.f32.mrf.mxu0
        %v1283 = vpop.f32.mrf.mxu0
        %1284 = vdwg.mxu0
        %s1285 = scalar_lea.vmem %s3, 32
        %v1286 = vld [vmem:[%s1285] sm:$0xf]
        %v1287 = vld [vmem:[%s1285 + $0x4] sm:$0xf]
        %v1288 = vld [vmem:[%s1285 + $0x8] sm:$0xf]
        %v1289 = vld [vmem:[%s1285 + $0xc] sm:$0xf]
        %s1290 = scalar_lea.vmem %s4, 2
        %v1291 = vld [vmem:[%s1290] sm:$0x1]
        %v1293 = vlaneseq
        %v1294 = vshrl.u32 %v1293, 7
        %v1295 = vsub.s32 0, %v1294
        %v1296 = vrot.slane %v1291, %v1295
        %v1302 = vunpack.c.l.b16 %v1286
        %v1303 = vunpack.c.l.b16 %v1287
        %v1304 = vunpack.c.l.b16 %v1288
        %v1305 = vunpack.c.l.b16 %v1289
        %v1306 = vpack.c.b16 %v1303, %v1302
        %v1307 = vpack.c.b16 %v1305, %v1304
        %1310 = vmatprep.subr.bf16.mxu0 0
        %1311 = vmatpush1.bf16.msra.mxu0 0
        %1312 = vmatprep.subr.bf16.mxu0 0
        %1313 = vmatpush1.bf16.msra.mxu0 0
        %1314 = vmatprep.subr.bf16.mxu0 0
        %1315 = vmatpush1.bf16.msra.mxu0 0
        %1316 = vmatprep.subr.bf16.mxu0 0
        %1317 = vmatpush1.bf16.msra.mxu0 0
        %1318 = vmatprep.subr.bf16.mxu0 0
        %1319 = vmatpush1.bf16.msra.mxu0 0
        %1320 = vmatprep.subr.bf16.mxu0 0
        %1321 = vmatpush1.bf16.msra.mxu0 0
        %1322 = vmatprep.subr.bf16.mxu0 0
        %1323 = vmatpush1.bf16.msra.mxu0 %v1307
        %1324 = vmatprep.subr.bf16.mxu0 0
        %1325 = vmatpush1.bf16.msra.mxu0 %v1306
        %1326 = vmatprep.subr.bf16.mxu0 0
        %1327 = vmatpush2.bf16.msra.mxu0 0
        %1328 = vmatprep.subr.bf16.mxu0 0
        %1329 = vmatpush2.bf16.msra.mxu0 0
        %1330 = vmatprep.subr.bf16.mxu0 0
        %1331 = vmatpush2.bf16.msra.mxu0 0
        %1332 = vmatprep.subr.bf16.mxu0 0
        %1333 = vmatpush2.bf16.msra.mxu0 0
        %1334 = vmatprep.subr.bf16.mxu0 0
        %1335 = vmatpush2.bf16.msra.mxu0 0
        %1336 = vmatprep.subr.bf16.mxu0 0
        %1337 = vmatpush2.bf16.msra.mxu0 0
        %1338 = vmatprep.subr.bf16.mxu0 0
        %1339 = vmatpush2.bf16.msra.mxu0 0
        %1340 = vmatprep.subr.bf16.mxu0 0
        %1341 = vmatpush2.bf16.msra.mxu0 0
        %1342 = vmatprep.mubr.bf16.mxu0 0
        %1343 = vmatmul.mubr.bf16.gmra.mxu0 %v607
        %v1344 = vpop.f32.mrf.mxu0
        %v1345 = vadd.f32 %v1296, %v1344
        %v1346 = vpop.f32.mrf.mxu0
        %v1347 = vpop.f32.mrf.mxu0
        %v1348 = vpop.f32.mrf.mxu0
        %1349 = vdwg.mxu0
        %s1350 = scalar_lea.vmem %s5, 32
        %v1351 = vld [vmem:[%s1350] sm:$0xf]
        %v1352 = vld [vmem:[%s1350 + $0x4] sm:$0xf]
        %v1353 = vld [vmem:[%s1350 + $0x8] sm:$0xf]
        %v1354 = vld [vmem:[%s1350 + $0xc] sm:$0xf]
        %s1355 = scalar_lea.vmem %s6, 2
        %v1356 = vld [vmem:[%s1355] sm:$0x1]
        %v1358 = vlaneseq
        %v1359 = vshrl.u32 %v1358, 7
        %v1360 = vsub.s32 0, %v1359
        %v1361 = vrot.slane %v1356, %v1360
        %v1367 = vunpack.c.l.b16 %v1351
        %v1368 = vunpack.c.l.b16 %v1352
        %v1369 = vunpack.c.l.b16 %v1353
        %v1370 = vunpack.c.l.b16 %v1354
        %v1371 = vpack.c.b16 %v1368, %v1367
        %v1372 = vpack.c.b16 %v1370, %v1369
        %1375 = vmatprep.subr.bf16.mxu0 0
        %1376 = vmatpush1.bf16.msra.mxu0 0
        %1377 = vmatprep.subr.bf16.mxu0 0
        %1378 = vmatpush1.bf16.msra.mxu0 0
        %1379 = vmatprep.subr.bf16.mxu0 0
        %1380 = vmatpush1.bf16.msra.mxu0 0
        %1381 = vmatprep.subr.bf16.mxu0 0
        %1382 = vmatpush1.bf16.msra.mxu0 0
        %1383 = vmatprep.subr.bf16.mxu0 0
        %1384 = vmatpush1.bf16.msra.mxu0 0
        %1385 = vmatprep.subr.bf16.mxu0 0
        %1386 = vmatpush1.bf16.msra.mxu0 0
        %1387 = vmatprep.subr.bf16.mxu0 0
        %1388 = vmatpush1.bf16.msra.mxu0 %v1372
        %1389 = vmatprep.subr.bf16.mxu0 0
        %1390 = vmatpush1.bf16.msra.mxu0 %v1371
        %1391 = vmatprep.subr.bf16.mxu0 0
        %1392 = vmatpush2.bf16.msra.mxu0 0
        %1393 = vmatprep.subr.bf16.mxu0 0
        %1394 = vmatpush2.bf16.msra.mxu0 0
        %1395 = vmatprep.subr.bf16.mxu0 0
        %1396 = vmatpush2.bf16.msra.mxu0 0
        %1397 = vmatprep.subr.bf16.mxu0 0
        %1398 = vmatpush2.bf16.msra.mxu0 0
        %1399 = vmatprep.subr.bf16.mxu0 0
        %1400 = vmatpush2.bf16.msra.mxu0 0
        %1401 = vmatprep.subr.bf16.mxu0 0
        %1402 = vmatpush2.bf16.msra.mxu0 0
        %1403 = vmatprep.subr.bf16.mxu0 0
        %1404 = vmatpush2.bf16.msra.mxu0 0
        %1405 = vmatprep.subr.bf16.mxu0 0
        %1406 = vmatpush2.bf16.msra.mxu0 0
        %1407 = vmatprep.mubr.bf16.mxu0 0
        %1408 = vmatmul.mubr.bf16.gmra.mxu0 %v607
        %v1409 = vpop.f32.mrf.mxu0
        %v1410 = vadd.f32 %v1361, %v1409
        %v1411 = vpop.f32.mrf.mxu0
        %v1412 = vpop.f32.mrf.mxu0
        %v1413 = vpop.f32.mrf.mxu0
        %1414 = vdwg.mxu0
        %s1415 = scalar_lea.vmem %s7, 32
        %v1416 = vld [vmem:[%s1415] sm:$0xf]
        %v1417 = vld [vmem:[%s1415 + $0x4] sm:$0xf]
        %v1418 = vld [vmem:[%s1415 + $0x8] sm:$0xf]
        %v1419 = vld [vmem:[%s1415 + $0xc] sm:$0xf]
        %s1420 = scalar_lea.vmem %s8, 2
        %v1421 = vld [vmem:[%s1420] sm:$0x1]
        %v1423 = vlaneseq
        %v1424 = vshrl.u32 %v1423, 7
        %v1425 = vsub.s32 0, %v1424
        %v1426 = vrot.slane %v1421, %v1425
        %v1432 = vunpack.c.l.b16 %v1416
        %v1433 = vunpack.c.l.b16 %v1417
        %v1434 = vunpack.c.l.b16 %v1418
        %v1435 = vunpack.c.l.b16 %v1419
        %v1436 = vpack.c.b16 %v1433, %v1432
        %v1437 = vpack.c.b16 %v1435, %v1434
        %1440 = vmatprep.subr.bf16.mxu0 0
        %1441 = vmatpush1.bf16.msra.mxu0 0
        %1442 = vmatprep.subr.bf16.mxu0 0
        %1443 = vmatpush1.bf16.msra.mxu0 0
        %1444 = vmatprep.subr.bf16.mxu0 0
        %1445 = vmatpush1.bf16.msra.mxu0 0
        %1446 = vmatprep.subr.bf16.mxu0 0
        %1447 = vmatpush1.bf16.msra.mxu0 0
        %1448 = vmatprep.subr.bf16.mxu0 0
        %1449 = vmatpush1.bf16.msra.mxu0 0
        %1450 = vmatprep.subr.bf16.mxu0 0
        %1451 = vmatpush1.bf16.msra.mxu0 0
        %1452 = vmatprep.subr.bf16.mxu0 0
        %1453 = vmatpush1.bf16.msra.mxu0 %v1437
        %1454 = vmatprep.subr.bf16.mxu0 0
        %1455 = vmatpush1.bf16.msra.mxu0 %v1436
        %1456 = vmatprep.subr.bf16.mxu0 0
        %1457 = vmatpush2.bf16.msra.mxu0 0
        %1458 = vmatprep.subr.bf16.mxu0 0
        %1459 = vmatpush2.bf16.msra.mxu0 0
        %1460 = vmatprep.subr.bf16.mxu0 0
        %1461 = vmatpush2.bf16.msra.mxu0 0
        %1462 = vmatprep.subr.bf16.mxu0 0
        %1463 = vmatpush2.bf16.msra.mxu0 0
        %1464 = vmatprep.subr.bf16.mxu0 0
        %1465 = vmatpush2.bf16.msra.mxu0 0
        %1466 = vmatprep.subr.bf16.mxu0 0
        %1467 = vmatpush2.bf16.msra.mxu0 0
        %1468 = vmatprep.subr.bf16.mxu0 0
        %1469 = vmatpush2.bf16.msra.mxu0 0
        %1470 = vmatprep.subr.bf16.mxu0 0
        %1471 = vmatpush2.bf16.msra.mxu0 0
        %1472 = vmatprep.mubr.bf16.mxu0 0
        %1473 = vmatmul.mubr.bf16.gmra.mxu0 %v607
        %v1474 = vpop.f32.mrf.mxu0
        %v1475 = vadd.f32 %v1426, %v1474
        %v1476 = vpop.f32.mrf.mxu0
        %v1477 = vpop.f32.mrf.mxu0
        %v1478 = vpop.f32.mrf.mxu0
        %1479 = vdwg.mxu0
        %v1480 = vpack.c.bf16 %v1345, %v1345
        %v1481 = vpack.c.bf16 %v1410, %v1410
        %v1483 = vsel %vm777, %v1480, 0
        %v1486 = vsel %vm777, %v1481, 0
        %1488 = vmatprep.subr.bf16.mxu0 0
        %1489 = vmatpush1.bf16.xpose.msra.mxu0 0
        %1490 = vmatprep.subr.bf16.mxu0 0
        %1491 = vmatpush1.bf16.xpose.msra.mxu0 0
        %1492 = vmatprep.subr.bf16.mxu0 0
        %1493 = vmatpush1.bf16.xpose.msra.mxu0 0
        %1494 = vmatprep.subr.bf16.mxu0 0
        %1495 = vmatpush1.bf16.xpose.msra.mxu0 0
        %1496 = vmatprep.subr.bf16.mxu0 0
        %1497 = vmatpush1.bf16.xpose.msra.mxu0 0
        %1498 = vmatprep.subr.bf16.mxu0 0
        %1499 = vmatpush1.bf16.xpose.msra.mxu0 0
        %1500 = vmatprep.subr.bf16.mxu0 0
        %1501 = vmatpush1.bf16.xpose.msra.mxu0 0
        %1502 = vmatprep.subr.bf16.mxu0 0
        %1503 = vmatpush1.bf16.xpose.msra.mxu0 %v1486
        %1504 = vmatprep.subr.bf16.mxu0 0
        %1505 = vmatpush2.bf16.xpose.msra.mxu0 0
        %1506 = vmatprep.subr.bf16.mxu0 0
        %1507 = vmatpush2.bf16.xpose.msra.mxu0 0
        %1508 = vmatprep.subr.bf16.mxu0 0
        %1509 = vmatpush2.bf16.xpose.msra.mxu0 0
        %1510 = vmatprep.subr.bf16.mxu0 0
        %1511 = vmatpush2.bf16.xpose.msra.mxu0 0
        %1512 = vmatprep.subr.bf16.mxu0 0
        %1513 = vmatpush2.bf16.xpose.msra.mxu0 0
        %1514 = vmatprep.subr.bf16.mxu0 0
        %1515 = vmatpush2.bf16.xpose.msra.mxu0 0
        %1516 = vmatprep.subr.bf16.mxu0 0
        %1517 = vmatpush2.bf16.xpose.msra.mxu0 0
        %1518 = vmatprep.subr.bf16.mxu0 0
        %1519 = vmatpush2.bf16.xpose.msra.mxu0 0
        %1520 = vmatprep.mubr.bf16.mxu0 0
        %1521 = vmatmul.mubr.bf16.gmra.mxu0 %v1483
        %v1522 = vpop.f32.mrf.mxu0
        %v1523 = vadd.f32 0.0, %v1522
        %v1524 = vpop.f32.mrf.mxu0
        %v1525 = vpop.f32.mrf.mxu0
        %v1526 = vpop.f32.mrf.mxu0
        %1527 = vdwg.mxu0
        %v1528 = vsel %vm582, %v1523, -1e+30
        %v1529 = vsel %vm777, %v1528, -inf
        %1530 = vmax.xlane.f32.xlu0 %v1529
        %v1531 = vpop.xlane.xlu0 %1530
        %v1532 = vsub.f32 %v1528, %v1531
        %v1533 = vmul.f32 %v1532, 1.442695
        %v1534 = vpow.pop %v1533
        %v1535 = vsel %vm777, %v1534, 0.0
        %1536 = vadd.xlane.f32.xlu0 %v1535
        %v1537 = vpop.xlane.xlu0 %1536
        %v1538 = vrcp.pop %v1537
        %v1539 = vmul.f32 %v1534, %v1538
        %v1540 = vpack.c.bf16 %v1539, %v1539
        %v1541 = vpack.c.bf16 %v1475, %v1475
        %v1543 = vsel %vm777, %v1540, 0
        %v1546 = vsel %vm841, %v1541, 0
        %1548 = vmatprep.subr.bf16.mxu0 0
        %1549 = vmatpush1.bf16.msra.mxu0 0
        %1550 = vmatprep.subr.bf16.mxu0 0
        %1551 = vmatpush1.bf16.msra.mxu0 0
        %1552 = vmatprep.subr.bf16.mxu0 0
        %1553 = vmatpush1.bf16.msra.mxu0 0
        %1554 = vmatprep.subr.bf16.mxu0 0
        %1555 = vmatpush1.bf16.msra.mxu0 0
        %1556 = vmatprep.subr.bf16.mxu0 0
        %1557 = vmatpush1.bf16.msra.mxu0 0
        %1558 = vmatprep.subr.bf16.mxu0 0
        %1559 = vmatpush1.bf16.msra.mxu0 0
        %1560 = vmatprep.subr.bf16.mxu0 0
        %1561 = vmatpush1.bf16.msra.mxu0 0
        %1562 = vmatprep.subr.bf16.mxu0 0
        %1563 = vmatpush1.bf16.msra.mxu0 %v1546
        %1564 = vmatprep.subr.bf16.mxu0 0
        %1565 = vmatpush2.bf16.msra.mxu0 0
        %1566 = vmatprep.subr.bf16.mxu0 0
        %1567 = vmatpush2.bf16.msra.mxu0 0
        %1568 = vmatprep.subr.bf16.mxu0 0
        %1569 = vmatpush2.bf16.msra.mxu0 0
        %1570 = vmatprep.subr.bf16.mxu0 0
        %1571 = vmatpush2.bf16.msra.mxu0 0
        %1572 = vmatprep.subr.bf16.mxu0 0
        %1573 = vmatpush2.bf16.msra.mxu0 0
        %1574 = vmatprep.subr.bf16.mxu0 0
        %1575 = vmatpush2.bf16.msra.mxu0 0
        %1576 = vmatprep.subr.bf16.mxu0 0
        %1577 = vmatpush2.bf16.msra.mxu0 0
        %1578 = vmatprep.subr.bf16.mxu0 0
        %1579 = vmatpush2.bf16.msra.mxu0 0
        %1580 = vmatprep.mubr.bf16.mxu0 0
        %1581 = vmatmul.mubr.bf16.gmra.mxu0 %v1543
        %v1582 = vpop.f32.mrf.mxu0
        %v1583 = vadd.f32 0.0, %v1582
        %v1584 = vpop.f32.mrf.mxu0
        %v1585 = vpop.f32.mrf.mxu0
        %v1586 = vpop.f32.mrf.mxu0
        %1587 = vdwg.mxu0
        %v1588 = vpack.c.bf16 %v1583, %v1583
        %s1589 = scalar_lea.vmem %s9, 8
        %v1590 = vld [vmem:[%s1589] sm:$0xf]
        %v1592 = vsel %vm777, %v1588, 0
        %v1595 = vsel %vm841, %v1590, 0
        %1597 = vmatprep.subr.bf16.mxu0 0
        %1598 = vmatpush1.bf16.msra.mxu0 0
        %1599 = vmatprep.subr.bf16.mxu0 0
        %1600 = vmatpush1.bf16.msra.mxu0 0
        %1601 = vmatprep.subr.bf16.mxu0 0
        %1602 = vmatpush1.bf16.msra.mxu0 0
        %1603 = vmatprep.subr.bf16.mxu0 0
        %1604 = vmatpush1.bf16.msra.mxu0 0
        %1605 = vmatprep.subr.bf16.mxu0 0
        %1606 = vmatpush1.bf16.msra.mxu0 0
        %1607 = vmatprep.subr.bf16.mxu0 0
        %1608 = vmatpush1.bf16.msra.mxu0 0
        %1609 = vmatprep.subr.bf16.mxu0 0
        %1610 = vmatpush1.bf16.msra.mxu0 0
        %1611 = vmatprep.subr.bf16.mxu0 0
        %1612 = vmatpush1.bf16.msra.mxu0 %v1595
        %1613 = vmatprep.subr.bf16.mxu0 0
        %1614 = vmatpush2.bf16.msra.mxu0 0
        %1615 = vmatprep.subr.bf16.mxu0 0
        %1616 = vmatpush2.bf16.msra.mxu0 0
        %1617 = vmatprep.subr.bf16.mxu0 0
        %1618 = vmatpush2.bf16.msra.mxu0 0
        %1619 = vmatprep.subr.bf16.mxu0 0
        %1620 = vmatpush2.bf16.msra.mxu0 0
        %1621 = vmatprep.subr.bf16.mxu0 0
        %1622 = vmatpush2.bf16.msra.mxu0 0
        %1623 = vmatprep.subr.bf16.mxu0 0
        %1624 = vmatpush2.bf16.msra.mxu0 0
        %1625 = vmatprep.subr.bf16.mxu0 0
        %1626 = vmatpush2.bf16.msra.mxu0 0
        %1627 = vmatprep.subr.bf16.mxu0 0
        %1628 = vmatpush2.bf16.msra.mxu0 0
        %1629 = vmatprep.mubr.bf16.mxu0 0
        %1630 = vmatmul.mubr.bf16.gmra.mxu0 %v1592
        %v1631 = vpop.f32.mrf.mxu0
        %v1632 = vadd.f32 0.0, %v1631
        %v1633 = vpop.f32.mrf.mxu0
        %v1634 = vpop.f32.mrf.mxu0
        %v1635 = vpop.f32.mrf.mxu0
        %1636 = vdwg.mxu0
        %v1637 = vadd.f32 %v1280, %v1632
        %s1638 = scalar_lea.vmem %s3, 48
        %v1639 = vld [vmem:[%s1638] sm:$0xf]
        %v1640 = vld [vmem:[%s1638 + $0x4] sm:$0xf]
        %v1641 = vld [vmem:[%s1638 + $0x8] sm:$0xf]
        %v1642 = vld [vmem:[%s1638 + $0xc] sm:$0xf]
        %s1643 = scalar_lea.vmem %s4, 3
        %v1644 = vld [vmem:[%s1643] sm:$0x1]
        %v1646 = vlaneseq
        %v1647 = vshrl.u32 %v1646, 7
        %v1648 = vsub.s32 0, %v1647
        %v1649 = vrot.slane %v1644, %v1648
        %v1655 = vunpack.c.l.b16 %v1639
        %v1656 = vunpack.c.l.b16 %v1640
        %v1657 = vunpack.c.l.b16 %v1641
        %v1658 = vunpack.c.l.b16 %v1642
        %v1659 = vpack.c.b16 %v1656, %v1655
        %v1660 = vpack.c.b16 %v1658, %v1657
        %1663 = vmatprep.subr.bf16.mxu0 0
        %1664 = vmatpush1.bf16.msra.mxu0 0
        %1665 = vmatprep.subr.bf16.mxu0 0
        %1666 = vmatpush1.bf16.msra.mxu0 0
        %1667 = vmatprep.subr.bf16.mxu0 0
        %1668 = vmatpush1.bf16.msra.mxu0 0
        %1669 = vmatprep.subr.bf16.mxu0 0
        %1670 = vmatpush1.bf16.msra.mxu0 0
        %1671 = vmatprep.subr.bf16.mxu0 0
        %1672 = vmatpush1.bf16.msra.mxu0 0
        %1673 = vmatprep.subr.bf16.mxu0 0
        %1674 = vmatpush1.bf16.msra.mxu0 0
        %1675 = vmatprep.subr.bf16.mxu0 0
        %1676 = vmatpush1.bf16.msra.mxu0 %v1660
        %1677 = vmatprep.subr.bf16.mxu0 0
        %1678 = vmatpush1.bf16.msra.mxu0 %v1659
        %1679 = vmatprep.subr.bf16.mxu0 0
        %1680 = vmatpush2.bf16.msra.mxu0 0
        %1681 = vmatprep.subr.bf16.mxu0 0
        %1682 = vmatpush2.bf16.msra.mxu0 0
        %1683 = vmatprep.subr.bf16.mxu0 0
        %1684 = vmatpush2.bf16.msra.mxu0 0
        %1685 = vmatprep.subr.bf16.mxu0 0
        %1686 = vmatpush2.bf16.msra.mxu0 0
        %1687 = vmatprep.subr.bf16.mxu0 0
        %1688 = vmatpush2.bf16.msra.mxu0 0
        %1689 = vmatprep.subr.bf16.mxu0 0
        %1690 = vmatpush2.bf16.msra.mxu0 0
        %1691 = vmatprep.subr.bf16.mxu0 0
        %1692 = vmatpush2.bf16.msra.mxu0 0
        %1693 = vmatprep.subr.bf16.mxu0 0
        %1694 = vmatpush2.bf16.msra.mxu0 0
        %1695 = vmatprep.mubr.bf16.mxu0 0
        %1696 = vmatmul.mubr.bf16.gmra.mxu0 %v607
        %v1697 = vpop.f32.mrf.mxu0
        %v1698 = vadd.f32 %v1649, %v1697
        %v1699 = vpop.f32.mrf.mxu0
        %v1700 = vpop.f32.mrf.mxu0
        %v1701 = vpop.f32.mrf.mxu0
        %1702 = vdwg.mxu0
        %s1703 = scalar_lea.vmem %s5, 48
        %v1704 = vld [vmem:[%s1703] sm:$0xf]
        %v1705 = vld [vmem:[%s1703 + $0x4] sm:$0xf]
        %v1706 = vld [vmem:[%s1703 + $0x8] sm:$0xf]
        %v1707 = vld [vmem:[%s1703 + $0xc] sm:$0xf]
        %s1708 = scalar_lea.vmem %s6, 3
        %v1709 = vld [vmem:[%s1708] sm:$0x1]
        %v1711 = vlaneseq
        %v1712 = vshrl.u32 %v1711, 7
        %v1713 = vsub.s32 0, %v1712
        %v1714 = vrot.slane %v1709, %v1713
        %v1720 = vunpack.c.l.b16 %v1704
        %v1721 = vunpack.c.l.b16 %v1705
        %v1722 = vunpack.c.l.b16 %v1706
        %v1723 = vunpack.c.l.b16 %v1707
        %v1724 = vpack.c.b16 %v1721, %v1720
        %v1725 = vpack.c.b16 %v1723, %v1722
        %1728 = vmatprep.subr.bf16.mxu0 0
        %1729 = vmatpush1.bf16.msra.mxu0 0
        %1730 = vmatprep.subr.bf16.mxu0 0
        %1731 = vmatpush1.bf16.msra.mxu0 0
        %1732 = vmatprep.subr.bf16.mxu0 0
        %1733 = vmatpush1.bf16.msra.mxu0 0
        %1734 = vmatprep.subr.bf16.mxu0 0
        %1735 = vmatpush1.bf16.msra.mxu0 0
        %1736 = vmatprep.subr.bf16.mxu0 0
        %1737 = vmatpush1.bf16.msra.mxu0 0
        %1738 = vmatprep.subr.bf16.mxu0 0
        %1739 = vmatpush1.bf16.msra.mxu0 0
        %1740 = vmatprep.subr.bf16.mxu0 0
        %1741 = vmatpush1.bf16.msra.mxu0 %v1725
        %1742 = vmatprep.subr.bf16.mxu0 0
        %1743 = vmatpush1.bf16.msra.mxu0 %v1724
        %1744 = vmatprep.subr.bf16.mxu0 0
        %1745 = vmatpush2.bf16.msra.mxu0 0
        %1746 = vmatprep.subr.bf16.mxu0 0
        %1747 = vmatpush2.bf16.msra.mxu0 0
        %1748 = vmatprep.subr.bf16.mxu0 0
        %1749 = vmatpush2.bf16.msra.mxu0 0
        %1750 = vmatprep.subr.bf16.mxu0 0
        %1751 = vmatpush2.bf16.msra.mxu0 0
        %1752 = vmatprep.subr.bf16.mxu0 0
        %1753 = vmatpush2.bf16.msra.mxu0 0
        %1754 = vmatprep.subr.bf16.mxu0 0
        %1755 = vmatpush2.bf16.msra.mxu0 0
        %1756 = vmatprep.subr.bf16.mxu0 0
        %1757 = vmatpush2.bf16.msra.mxu0 0
        %1758 = vmatprep.subr.bf16.mxu0 0
        %1759 = vmatpush2.bf16.msra.mxu0 0
        %1760 = vmatprep.mubr.bf16.mxu0 0
        %1761 = vmatmul.mubr.bf16.gmra.mxu0 %v607
        %v1762 = vpop.f32.mrf.mxu0
        %v1763 = vadd.f32 %v1714, %v1762
        %v1764 = vpop.f32.mrf.mxu0
        %v1765 = vpop.f32.mrf.mxu0
        %v1766 = vpop.f32.mrf.mxu0
        %1767 = vdwg.mxu0
        %s1768 = scalar_lea.vmem %s7, 48
        %v1769 = vld [vmem:[%s1768] sm:$0xf]
        %v1770 = vld [vmem:[%s1768 + $0x4] sm:$0xf]
        %v1771 = vld [vmem:[%s1768 + $0x8] sm:$0xf]
        %v1772 = vld [vmem:[%s1768 + $0xc] sm:$0xf]
        %s1773 = scalar_lea.vmem %s8, 3
        %v1774 = vld [vmem:[%s1773] sm:$0x1]
        %v1776 = vlaneseq
        %v1777 = vshrl.u32 %v1776, 7
        %v1778 = vsub.s32 0, %v1777
        %v1779 = vrot.slane %v1774, %v1778
        %v1785 = vunpack.c.l.b16 %v1769
        %v1786 = vunpack.c.l.b16 %v1770
        %v1787 = vunpack.c.l.b16 %v1771
        %v1788 = vunpack.c.l.b16 %v1772
        %v1789 = vpack.c.b16 %v1786, %v1785
        %v1790 = vpack.c.b16 %v1788, %v1787
        %1793 = vmatprep.subr.bf16.mxu0 0
        %1794 = vmatpush1.bf16.msra.mxu0 0
        %1795 = vmatprep.subr.bf16.mxu0 0
        %1796 = vmatpush1.bf16.msra.mxu0 0
        %1797 = vmatprep.subr.bf16.mxu0 0
        %1798 = vmatpush1.bf16.msra.mxu0 0
        %1799 = vmatprep.subr.bf16.mxu0 0
        %1800 = vmatpush1.bf16.msra.mxu0 0
        %1801 = vmatprep.subr.bf16.mxu0 0
        %1802 = vmatpush1.bf16.msra.mxu0 0
        %1803 = vmatprep.subr.bf16.mxu0 0
        %1804 = vmatpush1.bf16.msra.mxu0 0
        %1805 = vmatprep.subr.bf16.mxu0 0
        %1806 = vmatpush1.bf16.msra.mxu0 %v1790
        %1807 = vmatprep.subr.bf16.mxu0 0
        %1808 = vmatpush1.bf16.msra.mxu0 %v1789
        %1809 = vmatprep.subr.bf16.mxu0 0
        %1810 = vmatpush2.bf16.msra.mxu0 0
        %1811 = vmatprep.subr.bf16.mxu0 0
        %1812 = vmatpush2.bf16.msra.mxu0 0
        %1813 = vmatprep.subr.bf16.mxu0 0
        %1814 = vmatpush2.bf16.msra.mxu0 0
        %1815 = vmatprep.subr.bf16.mxu0 0
        %1816 = vmatpush2.bf16.msra.mxu0 0
        %1817 = vmatprep.subr.bf16.mxu0 0
        %1818 = vmatpush2.bf16.msra.mxu0 0
        %1819 = vmatprep.subr.bf16.mxu0 0
        %1820 = vmatpush2.bf16.msra.mxu0 0
        %1821 = vmatprep.subr.bf16.mxu0 0
        %1822 = vmatpush2.bf16.msra.mxu0 0
        %1823 = vmatprep.subr.bf16.mxu0 0
        %1824 = vmatpush2.bf16.msra.mxu0 0
        %1825 = vmatprep.mubr.bf16.mxu0 0
        %1826 = vmatmul.mubr.bf16.gmra.mxu0 %v607
        %v1827 = vpop.f32.mrf.mxu0
        %v1828 = vadd.f32 %v1779, %v1827
        %v1829 = vpop.f32.mrf.mxu0
        %v1830 = vpop.f32.mrf.mxu0
        %v1831 = vpop.f32.mrf.mxu0
        %1832 = vdwg.mxu0
        %v1833 = vpack.c.bf16 %v1698, %v1698
        %v1834 = vpack.c.bf16 %v1763, %v1763
        %v1836 = vsel %vm777, %v1833, 0
        %v1839 = vsel %vm777, %v1834, 0
        %1841 = vmatprep.subr.bf16.mxu0 0
        %1842 = vmatpush1.bf16.xpose.msra.mxu0 0
        %1843 = vmatprep.subr.bf16.mxu0 0
        %1844 = vmatpush1.bf16.xpose.msra.mxu0 0
        %1845 = vmatprep.subr.bf16.mxu0 0
        %1846 = vmatpush1.bf16.xpose.msra.mxu0 0
        %1847 = vmatprep.subr.bf16.mxu0 0
        %1848 = vmatpush1.bf16.xpose.msra.mxu0 0
        %1849 = vmatprep.subr.bf16.mxu0 0
        %1850 = vmatpush1.bf16.xpose.msra.mxu0 0
        %1851 = vmatprep.subr.bf16.mxu0 0
        %1852 = vmatpush1.bf16.xpose.msra.mxu0 0
        %1853 = vmatprep.subr.bf16.mxu0 0
        %1854 = vmatpush1.bf16.xpose.msra.mxu0 0
        %1855 = vmatprep.subr.bf16.mxu0 0
        %1856 = vmatpush1.bf16.xpose.msra.mxu0 %v1839
        %1857 = vmatprep.subr.bf16.mxu0 0
        %1858 = vmatpush2.bf16.xpose.msra.mxu0 0
        %1859 = vmatprep.subr.bf16.mxu0 0
        %1860 = vmatpush2.bf16.xpose.msra.mxu0 0
        %1861 = vmatprep.subr.bf16.mxu0 0
        %1862 = vmatpush2.bf16.xpose.msra.mxu0 0
        %1863 = vmatprep.subr.bf16.mxu0 0
        %1864 = vmatpush2.bf16.xpose.msra.mxu0 0
        %1865 = vmatprep.subr.bf16.mxu0 0
        %1866 = vmatpush2.bf16.xpose.msra.mxu0 0
        %1867 = vmatprep.subr.bf16.mxu0 0
        %1868 = vmatpush2.bf16.xpose.msra.mxu0 0
        %1869 = vmatprep.subr.bf16.mxu0 0
        %1870 = vmatpush2.bf16.xpose.msra.mxu0 0
        %1871 = vmatprep.subr.bf16.mxu0 0
        %1872 = vmatpush2.bf16.xpose.msra.mxu0 0
        %1873 = vmatprep.mubr.bf16.mxu0 0
        %1874 = vmatmul.mubr.bf16.gmra.mxu0 %v1836
        %v1875 = vpop.f32.mrf.mxu0
        %v1876 = vadd.f32 0.0, %v1875
        %v1877 = vpop.f32.mrf.mxu0
        %v1878 = vpop.f32.mrf.mxu0
        %v1879 = vpop.f32.mrf.mxu0
        %1880 = vdwg.mxu0
        %v1881 = vsel %vm582, %v1876, -1e+30
        %v1882 = vsel %vm777, %v1881, -inf
        %1883 = vmax.xlane.f32.xlu0 %v1882
        %v1884 = vpop.xlane.xlu0 %1883
        %v1885 = vsub.f32 %v1881, %v1884
        %v1886 = vmul.f32 %v1885, 1.442695
        %v1887 = vpow.pop %v1886
        %v1888 = vsel %vm777, %v1887, 0.0
        %1889 = vadd.xlane.f32.xlu0 %v1888
        %v1890 = vpop.xlane.xlu0 %1889
        %v1891 = vrcp.pop %v1890
        %v1892 = vmul.f32 %v1887, %v1891
        %v1893 = vpack.c.bf16 %v1892, %v1892
        %v1894 = vpack.c.bf16 %v1828, %v1828
        %v1896 = vsel %vm777, %v1893, 0
        %v1899 = vsel %vm841, %v1894, 0
        %1901 = vmatprep.subr.bf16.mxu0 0
        %1902 = vmatpush1.bf16.msra.mxu0 0
        %1903 = vmatprep.subr.bf16.mxu0 0
        %1904 = vmatpush1.bf16.msra.mxu0 0
        %1905 = vmatprep.subr.bf16.mxu0 0
        %1906 = vmatpush1.bf16.msra.mxu0 0
        %1907 = vmatprep.subr.bf16.mxu0 0
        %1908 = vmatpush1.bf16.msra.mxu0 0
        %1909 = vmatprep.subr.bf16.mxu0 0
        %1910 = vmatpush1.bf16.msra.mxu0 0
        %1911 = vmatprep.subr.bf16.mxu0 0
        %1912 = vmatpush1.bf16.msra.mxu0 0
        %1913 = vmatprep.subr.bf16.mxu0 0
        %1914 = vmatpush1.bf16.msra.mxu0 0
        %1915 = vmatprep.subr.bf16.mxu0 0
        %1916 = vmatpush1.bf16.msra.mxu0 %v1899
        %1917 = vmatprep.subr.bf16.mxu0 0
        %1918 = vmatpush2.bf16.msra.mxu0 0
        %1919 = vmatprep.subr.bf16.mxu0 0
        %1920 = vmatpush2.bf16.msra.mxu0 0
        %1921 = vmatprep.subr.bf16.mxu0 0
        %1922 = vmatpush2.bf16.msra.mxu0 0
        %1923 = vmatprep.subr.bf16.mxu0 0
        %1924 = vmatpush2.bf16.msra.mxu0 0
        %1925 = vmatprep.subr.bf16.mxu0 0
        %1926 = vmatpush2.bf16.msra.mxu0 0
        %1927 = vmatprep.subr.bf16.mxu0 0
        %1928 = vmatpush2.bf16.msra.mxu0 0
        %1929 = vmatprep.subr.bf16.mxu0 0
        %1930 = vmatpush2.bf16.msra.mxu0 0
        %1931 = vmatprep.subr.bf16.mxu0 0
        %1932 = vmatpush2.bf16.msra.mxu0 0
        %1933 = vmatprep.mubr.bf16.mxu0 0
        %1934 = vmatmul.mubr.bf16.gmra.mxu0 %v1896
        %v1935 = vpop.f32.mrf.mxu0
        %v1936 = vadd.f32 0.0, %v1935
        %v1937 = vpop.f32.mrf.mxu0
        %v1938 = vpop.f32.mrf.mxu0
        %v1939 = vpop.f32.mrf.mxu0
        %1940 = vdwg.mxu0
        %v1941 = vpack.c.bf16 %v1936, %v1936
        %s1942 = scalar_lea.vmem %s9, 12
        %v1943 = vld [vmem:[%s1942] sm:$0xf]
        %v1945 = vsel %vm777, %v1941, 0
        %v1948 = vsel %vm841, %v1943, 0
        %1950 = vmatprep.subr.bf16.mxu0 0
        %1951 = vmatpush1.bf16.msra.mxu0 0
        %1952 = vmatprep.subr.bf16.mxu0 0
        %1953 = vmatpush1.bf16.msra.mxu0 0
        %1954 = vmatprep.subr.bf16.mxu0 0
        %1955 = vmatpush1.bf16.msra.mxu0 0
        %1956 = vmatprep.subr.bf16.mxu0 0
        %1957 = vmatpush1.bf16.msra.mxu0 0
        %1958 = vmatprep.subr.bf16.mxu0 0
        %1959 = vmatpush1.bf16.msra.mxu0 0
        %1960 = vmatprep.subr.bf16.mxu0 0
        %1961 = vmatpush1.bf16.msra.mxu0 0
        %1962 = vmatprep.subr.bf16.mxu0 0
        %1963 = vmatpush1.bf16.msra.mxu0 0
        %1964 = vmatprep.subr.bf16.mxu0 0
        %1965 = vmatpush1.bf16.msra.mxu0 %v1948
        %1966 = vmatprep.subr.bf16.mxu0 0
        %1967 = vmatpush2.bf16.msra.mxu0 0
        %1968 = vmatprep.subr.bf16.mxu0 0
        %1969 = vmatpush2.bf16.msra.mxu0 0
        %1970 = vmatprep.subr.bf16.mxu0 0
        %1971 = vmatpush2.bf16.msra.mxu0 0
        %1972 = vmatprep.subr.bf16.mxu0 0
        %1973 = vmatpush2.bf16.msra.mxu0 0
        %1974 = vmatprep.subr.bf16.mxu0 0
        %1975 = vmatpush2.bf16.msra.mxu0 0
        %1976 = vmatprep.subr.bf16.mxu0 0
        %1977 = vmatpush2.bf16.msra.mxu0 0
        %1978 = vmatprep.subr.bf16.mxu0 0
        %1979 = vmatpush2.bf16.msra.mxu0 0
        %1980 = vmatprep.subr.bf16.mxu0 0
        %1981 = vmatpush2.bf16.msra.mxu0 0
        %1982 = vmatprep.mubr.bf16.mxu0 0
        %1983 = vmatmul.mubr.bf16.gmra.mxu0 %v1945
        %v1984 = vpop.f32.mrf.mxu0
        %v1985 = vadd.f32 0.0, %v1984
        %v1986 = vpop.f32.mrf.mxu0
        %v1987 = vpop.f32.mrf.mxu0
        %v1988 = vpop.f32.mrf.mxu0
        %1989 = vdwg.mxu0
        %v1990 = vadd.f32 %v1637, %v1985
        %v1991 = vld [vmem:[%s10] sm:$0x1]
        %v1993 = vlaneseq
        %v1994 = vshrl.u32 %v1993, 7
        %v1995 = vsub.s32 0, %v1994
        %v1996 = vrot.slane %v1991, %v1995
        %v1998 = vadd.f32 %v1990, %v1996
        %v1999 = vadd.f32 %v545, %v1998
        %v2000 = vld [vmem:[%s11] sm:$0x1]
        %v2001 = vld [vmem:[%s12] sm:$0x1]
        %v2002 = vsel %vm548, %v1999, 0.0
        %2003 = vadd.xlane.f32.xlu0 %v2002
        %v2004 = vpop.xlane.xlu0 %2003
        %v2005 = vmul.f32 %v2004, %v552
        %v2006 = vsub.f32 %v1999, %v2005
        %v2007 = vmul.f32 %v2006, %v2006
        %v2008 = vsel %vm548, %v2007, 0.0
        %2009 = vadd.xlane.f32.xlu0 %v2008
        %v2010 = vpop.xlane.xlu0 %2009
        %v2011 = vmul.f32 %v2010, %v552
        %v2012 = vadd.f32 %v2011, 1e-05
        %v2013 = vrsqrt.pop %v2012
        %v2014 = vmul.f32 %v2006, %v2013
        %v2016 = vlaneseq
        %v2017 = vshrl.u32 %v2016, 7
        %v2018 = vsub.s32 0, %v2017
        %v2019 = vrot.slane %v2000, %v2018
        %v2021 = vmul.f32 %v2014, %v2019
        %v2023 = vlaneseq
        %v2024 = vshrl.u32 %v2023, 7
        %v2025 = vsub.s32 0, %v2024
        %v2026 = vrot.slane %v2001, %v2025
        %v2028 = vadd.f32 %v2021, %v2026
        %v2029 = vpack.c.bf16 %v2028, %v2028
        %v2030 = vld [vmem:[%s13] sm:$0xf]
        %v2031 = vld [vmem:[%s13 + $0x4] sm:$0xf]
        %v2032 = vld [vmem:[%s13 + $0x8] sm:$0xf]
        %v2033 = vld [vmem:[%s13 + $0xc] sm:$0xf]
        %v2034 = vld [vmem:[%s14] sm:$0x1]
        %v2036 = vlaneseq
        %v2037 = vshrl.u32 %v2036, 7
        %v2038 = vsub.s32 0, %v2037
        %v2039 = vrot.slane %v2034, %v2038
        %v2045 = vunpack.c.l.b16 %v2030
        %v2046 = vunpack.c.l.b16 %v2031
        %v2047 = vunpack.c.l.b16 %v2032
        %v2048 = vunpack.c.l.b16 %v2033
        %v2049 = vpack.c.b16 %v2046, %v2045
        %v2050 = vpack.c.b16 %v2048, %v2047
        %v2054 = vsel %vm548, %v2029, 0
        %2056 = vmatprep.subr.bf16.mxu0 0
        %2057 = vmatpush1.bf16.msra.mxu0 0
        %2058 = vmatprep.subr.bf16.mxu0 0
        %2059 = vmatpush1.bf16.msra.mxu0 0
        %2060 = vmatprep.subr.bf16.mxu0 0
        %2061 = vmatpush1.bf16.msra.mxu0 0
        %2062 = vmatprep.subr.bf16.mxu0 0
        %2063 = vmatpush1.bf16.msra.mxu0 0
        %2064 = vmatprep.subr.bf16.mxu0 0
        %2065 = vmatpush1.bf16.msra.mxu0 0
        %2066 = vmatprep.subr.bf16.mxu0 0
        %2067 = vmatpush1.bf16.msra.mxu0 0
        %2068 = vmatprep.subr.bf16.mxu0 0
        %2069 = vmatpush1.bf16.msra.mxu0 %v2050
        %2070 = vmatprep.subr.bf16.mxu0 0
        %2071 = vmatpush1.bf16.msra.mxu0 %v2049
        %2072 = vmatprep.subr.bf16.mxu0 0
        %2073 = vmatpush2.bf16.msra.mxu0 0
        %2074 = vmatprep.subr.bf16.mxu0 0
        %2075 = vmatpush2.bf16.msra.mxu0 0
        %2076 = vmatprep.subr.bf16.mxu0 0
        %2077 = vmatpush2.bf16.msra.mxu0 0
        %2078 = vmatprep.subr.bf16.mxu0 0
        %2079 = vmatpush2.bf16.msra.mxu0 0
        %2080 = vmatprep.subr.bf16.mxu0 0
        %2081 = vmatpush2.bf16.msra.mxu0 0
        %2082 = vmatprep.subr.bf16.mxu0 0
        %2083 = vmatpush2.bf16.msra.mxu0 0
        %2084 = vmatprep.subr.bf16.mxu0 0
        %2085 = vmatpush2.bf16.msra.mxu0 0
        %2086 = vmatprep.subr.bf16.mxu0 0
        %2087 = vmatpush2.bf16.msra.mxu0 0
        %2088 = vmatprep.mubr.bf16.mxu0 0
        %2089 = vmatmul.mubr.bf16.gmra.mxu0 %v2054
        %v2090 = vpop.f32.mrf.mxu0
        %v2091 = vadd.f32 %v2039, %v2090
        %v2092 = vpop.f32.mrf.mxu0
        %v2093 = vpop.f32.mrf.mxu0
        %v2094 = vpop.f32.mrf.mxu0
        %2095 = vdwg.mxu0
        %v2096 = vmul.f32 %v2091, 1.702
        %v2097 = vxor.u32 %v2096, 2147483648
        %v2098 = vmul.f32 %v2097, 1.442695
        %v2099 = vpow.pop %v2098
        %v2100 = vadd.f32 %v2099, 1.0
        %v2101 = vrcp.pop %v2100
        %v2102 = vmul.f32 1.0, %v2101
        %v2103 = vmul.f32 %v2091, %v2102
        %v2104 = vpack.c.bf16 %v2103, %v2103
        %v2105 = vld [vmem:[%s15] sm:$0xf]
        %v2106 = vld [vmem:[%s15 + $0x4] sm:$0xf]
        %v2107 = vld [vmem:[%s15 + $0x8] sm:$0xf]
        %v2108 = vld [vmem:[%s15 + $0xc] sm:$0xf]
        %v2109 = vld [vmem:[%s15 + $0x10] sm:$0xf]
        %v2110 = vld [vmem:[%s15 + $0x14] sm:$0xf]
        %v2111 = vld [vmem:[%s15 + $0x18] sm:$0xf]
        %v2112 = vld [vmem:[%s15 + $0x1c] sm:$0xf]
        %v2113 = vld [vmem:[%s15 + $0x20] sm:$0xf]
        %v2114 = vld [vmem:[%s15 + $0x24] sm:$0xf]
        %v2115 = vld [vmem:[%s15 + $0x28] sm:$0xf]
        %v2116 = vld [vmem:[%s15 + $0x2c] sm:$0xf]
        %v2117 = vld [vmem:[%s15 + $0x30] sm:$0xf]
        %v2118 = vld [vmem:[%s15 + $0x34] sm:$0xf]
        %v2119 = vld [vmem:[%s15 + $0x38] sm:$0xf]
        %v2120 = vld [vmem:[%s15 + $0x3c] sm:$0xf]
        %v2121 = vld [vmem:[%s16] sm:$0x1]
        %v2123 = vlaneseq
        %v2124 = vshrl.u32 %v2123, 7
        %v2125 = vsub.s32 0, %v2124
        %v2126 = vrot.slane %v2121, %v2125
        %v2144 = vunpack.c.l.b16 %v2105
        %v2145 = vunpack.c.l.b16 %v2106
        %v2146 = vunpack.c.l.b16 %v2107
        %v2147 = vunpack.c.l.b16 %v2108
        %v2148 = vunpack.c.l.b16 %v2109
        %v2149 = vunpack.c.l.b16 %v2110
        %v2150 = vunpack.c.l.b16 %v2111
        %v2151 = vunpack.c.l.b16 %v2112
        %v2152 = vunpack.c.l.b16 %v2113
        %v2153 = vunpack.c.l.b16 %v2114
        %v2154 = vunpack.c.l.b16 %v2115
        %v2155 = vunpack.c.l.b16 %v2116
        %v2156 = vunpack.c.l.b16 %v2117
        %v2157 = vunpack.c.l.b16 %v2118
        %v2158 = vunpack.c.l.b16 %v2119
        %v2159 = vunpack.c.l.b16 %v2120
        %v2160 = vpack.c.b16 %v2145, %v2144
        %v2161 = vpack.c.b16 %v2147, %v2146
        %v2162 = vpack.c.b16 %v2149, %v2148
        %v2163 = vpack.c.b16 %v2151, %v2150
        %v2164 = vpack.c.b16 %v2153, %v2152
        %v2165 = vpack.c.b16 %v2155, %v2154
        %v2166 = vpack.c.b16 %v2157, %v2156
        %v2167 = vpack.c.b16 %v2159, %v2158
        %2176 = vmatprep.subr.bf16.mxu0 0
        %2177 = vmatpush1.bf16.msra.mxu0 %v2167
        %2178 = vmatprep.subr.bf16.mxu0 0
        %2179 = vmatpush1.bf16.msra.mxu0 %v2166
        %2180 = vmatprep.subr.bf16.mxu0 0
        %2181 = vmatpush1.bf16.msra.mxu0 %v2165
        %2182 = vmatprep.subr.bf16.mxu0 0
        %2183 = vmatpush1.bf16.msra.mxu0 %v2164
        %2184 = vmatprep.subr.bf16.mxu0 0
        %2185 = vmatpush1.bf16.msra.mxu0 %v2163
        %2186 = vmatprep.subr.bf16.mxu0 0
        %2187 = vmatpush1.bf16.msra.mxu0 %v2162
        %2188 = vmatprep.subr.bf16.mxu0 0
        %2189 = vmatpush1.bf16.msra.mxu0 %v2161
        %2190 = vmatprep.subr.bf16.mxu0 0
        %2191 = vmatpush1.bf16.msra.mxu0 %v2160
        %2192 = vmatprep.subr.bf16.mxu0 0
        %2193 = vmatpush2.bf16.msra.mxu0 0
        %2194 = vmatprep.subr.bf16.mxu0 0
        %2195 = vmatpush2.bf16.msra.mxu0 0
        %2196 = vmatprep.subr.bf16.mxu0 0
        %2197 = vmatpush2.bf16.msra.mxu0 0
        %2198 = vmatprep.subr.bf16.mxu0 0
        %2199 = vmatpush2.bf16.msra.mxu0 0
        %2200 = vmatprep.subr.bf16.mxu0 0
        %2201 = vmatpush2.bf16.msra.mxu0 0
        %2202 = vmatprep.subr.bf16.mxu0 0
        %2203 = vmatpush2.bf16.msra.mxu0 0
        %2204 = vmatprep.subr.bf16.mxu0 0
        %2205 = vmatpush2.bf16.msra.mxu0 0
        %2206 = vmatprep.subr.bf16.mxu0 0
        %2207 = vmatpush2.bf16.msra.mxu0 0
        %2208 = vmatprep.mubr.bf16.mxu0 0
        %2209 = vmatmul.mubr.bf16.gmra.mxu0 %v2104
        %v2210 = vpop.f32.mrf.mxu0
        %v2211 = vadd.f32 %v2126, %v2210
        %v2212 = vpop.f32.mrf.mxu0
        %v2213 = vpop.f32.mrf.mxu0
        %v2214 = vpop.f32.mrf.mxu0
        %2215 = vdwg.mxu0
        %v2216 = vadd.f32 %v1999, %v2211
        %2217 = vst.msk [vmem:[%s539] sm:$0xff] %vm548, %v2216
        %s2218 = sand.u32 %s401, 1
        %s2219 = scalar_lea.sflag [#allocation3], %s2218
        %s2220 = sand.u32 %s401, 1
        %s2221 = smul.addr %s2220, 8
        %s2222 = scalar_lea.vmem [#allocation2], %s2221
        // Predicated region
        $region89: #{tpu_custom_call.1} parent=87 // pred_check
          %p2223 = pneg %p411
        $region90: #{tpu_custom_call.1} parent=87 // pred_check_branch
          %2225 = sbr.rel (%p2223) target = $region92
        $region91: #{tpu_custom_call.1} parent=87 // pred_region
          %s2227 = ssub.s32 128, 128
          %2228 = vsyncadd %s2219, %s2227
          %s2229 = smul.addr %s31, 128
          %s2230 = scalar_lea.hbm %s17, %s2229
          %s2232 = sshll.u32 %s2222, 4
          %s2233 = int_to_ptr.vmem [resolvable:$true] %s2232
          %2235 = dma.vmem_to_hbm [thread:$0]  %s2233, 128, %s2230, %s2219
        $region92: #{tpu_custom_call.1} parent=87 // pred_fallthru
          _
      $region88: #{tpu_custom_call.1} parent=5 // pred_fallthru
        _
      %p2236 = scmp.le.s32.totalorder 2, %s26
      // Predicated region
      $region93: #{tpu_custom_call.1} parent=5 // pred_check
        %p2237 = pneg %p2236
      $region94: #{tpu_custom_call.1} parent=5 // pred_check_branch
        %2239 = sbr.rel (%p2237) target = $region96
      $region95: #{tpu_custom_call.1} parent=5 // pred_region
        %s2240 = ssub.s32 %s26, 2
        // Predicated region
        $region97: #{tpu_custom_call.1} parent=95 // pred_check
          %p2241 = pneg %p417
        $region98: #{tpu_custom_call.1} parent=95 // pred_check_branch
          %2243 = sbr.rel (%p2241) target = $region100
        $region99: #{tpu_custom_call.1} parent=95 // pred_region
          %s2244 = sand.u32 %s402, 1
          %s2245 = scalar_lea.sflag [#allocation3], %s2244
          %s2246 = sand.u32 %s402, 1
          %s2247 = smul.addr %s2246, 8
          %s2248 = scalar_lea.vmem [#allocation2], %s2247
          %2249 = dma.done %s2245, 128
        $region100: #{tpu_custom_call.1} parent=95 // pred_fallthru
          _
      $region96: #{tpu_custom_call.1} parent=5 // pred_fallthru
        _
    $region6: #{tpu_custom_call.1} parent=1 // loop_footer
      %s30 = sadd.s32 1, %s26
    $region7: #{tpu_custom_call.1} parent=1 // loop_footer_branch
      %25 = sbr.rel target = $region3
    $region8: #{tpu_custom_call.1} parent=1 // loop_exit
      _
    %2250 = vsyncpa [#allocation3], 1
    %s2251 = scalar_lea.sflag [#allocation3], 1
    %2252 = vsyncpa %s2251, 1

</llo_original>
